<compile_context>
chip_gen: v5e
topology: v5e:2x2
jax: 0.10.0
libtpu: 0.0.40
codegen_flags: <defaults>
</compile_context>

<pallas_src>
import jax
import jax.numpy as jnp
from jax.experimental import pallas as pl
from jax.experimental.pallas import tpu as pltpu

BN_EPS = 1e-5
LEAKY_SLOPE = 0.01  # torch.nn.LeakyReLU default


# ---------------------------------------------------------------------------
# Helpers
# ---------------------------------------------------------------------------
def _round_up(x, m):
    return ((x + m - 1) // m) * m


def _pad_size(n):
    """Padded node count so the chosen tiles divide it."""
    npad = _round_up(max(n, 1), 128)
    if npad > 256:
        npad = _round_up(npad, 256)
    return npad


def _tiles_for_padded(npad):
    """(row tile tm, reduction tile tk) for a padded node count."""
    if npad <= 256:
        return npad, npad
    tm = 256
    tk = 512 if npad % 512 == 0 else 256
    return tm, tk


def _vmem_limit_bytes():
    """Per-generation VMEM budget: ~48 MiB on v7x (64 MiB phys), ~100 MiB on v5e/v6e."""
    cap = 128 * 1024 * 1024
    try:
        info = pltpu.get_tpu_info()
        c = getattr(info, "vmem_capacity_bytes", None)
        if isinstance(c, int) and c > 0:
            cap = c
    except Exception:
        pass
    return int(min(cap - 16 * 1024 * 1024, 100 * 1024 * 1024))


# ---------------------------------------------------------------------------
# Kernel: one tiled GCN propagation layer  out_i = f( sum_k A[i,k] @ (x[k] @ W) )
# ---------------------------------------------------------------------------
def make_prop_kernel(with_in_bias: bool, with_head: bool):
    """Builds the per-layer kernel.

    Refs:
      xin_ref  : [Np, Fin]  bf16, whole-array VMEM-resident activations
      w_ref    : [Fin, Hp]  bf16, resident folded weight
      slab_ref : [8, Hp]    f32 bias slab (0: b_in, 1: bcf, 2: w_out^T, 3: b_out)
      a_ref    : [tm, tk]   bf16 streamed A_hat tile
      out_ref  : [tm, Hp] bf16 (hidden layer)  or  [1, tm] f32 (head)
      acc_ref  : [tm, Hp]   f32 VMEM accumulator scratch
    """

    def kernel(xin_ref, w_ref, slab_ref, a_ref, out_ref, acc_ref):
        f32, bf16 = jnp.float32, jnp.bfloat16
        k = pl.program_id(1)
        nk = pl.num_programs(1)
        tk = a_ref.shape[1]

        @pl.when(k == 0)
        def _():
            acc_ref[...] = jnp.zeros_like(acc_ref)

        # Inner linear for this reduction tile, recomputed per (i, k) from the
        # VMEM-resident activations (no extra HBM traffic).
        start = pl.multiple_of(k * tk, tk)
        xk = xin_ref[pl.ds(start, tk), :]                               # [tk, Fin]
        hw = jnp.dot(xk, w_ref[...], preferred_element_type=f32)       # [tk, Hp]
        if with_in_bias:
            hw = hw + slab_ref[0:1, :]

        acc_ref[...] += jnp.dot(a_ref[...], hw.astype(bf16),
                                preferred_element_type=f32)

        @pl.when(k == nk - 1)
        def _():
            h = acc_ref[...] + slab_ref[1:2, :]                         # BN-folded bias
            h = jnp.where(h > 0, h, LEAKY_SLOPE * h)                    # LeakyReLU
            if with_head:
                w_out = slab_ref[2:3, :]                                # [1, Hp]
                b_out = slab_ref[3:4, 0:1]                              # [1, 1]
                # Lane-dense [1, tm] projection: w_out @ h^T
                o = jax.lax.dot_general(w_out, h, (((1,), (1,)), ((), ())),
                                        preferred_element_type=jnp.float32) + b_out
                out_ref[...] = 1.0 / (1.0 + jnp.exp(-o))                # exact sigmoid
            else:
                out_ref[...] = h.astype(out_ref.dtype)

    return kernel


def _prop_call(xin, w, slab, a_p, tm, tk, *, with_in_bias, with_head, vmem_limit):
    npad = a_p.shape[0]
    hp = w.shape[1]
    grid = (npad // tm, npad // tk)

    if with_head:
        out_shape = jax.ShapeDtypeStruct((1, npad), jnp.float32)
        out_spec = pl.BlockSpec((1, tm), lambda i, k: (0, i))
    else:
        out_shape = jax.ShapeDtypeStruct((npad, hp), jnp.bfloat16)
        out_spec = pl.BlockSpec((tm, hp), lambda i, k: (i, 0))

    return pl.pallas_call(
        make_prop_kernel(with_in_bias, with_head),
        out_shape=out_shape,
        grid_spec=pltpu.PrefetchScalarGridSpec(
            num_scalar_prefetch=0,
            grid=grid,
            in_specs=[
                pl.BlockSpec((npad, xin.shape[1]), lambda i, k: (0, 0)),  # resident acts
                pl.BlockSpec((w.shape[0], hp), lambda i, k: (0, 0)),      # resident weight
                pl.BlockSpec((8, hp), lambda i, k: (0, 0)),               # resident bias slab
                pl.BlockSpec((tm, tk), lambda i, k: (i, k)),              # streamed A_hat
            ],
            out_specs=out_spec,
            scratch_shapes=[pltpu.VMEM((tm, hp), jnp.float32)],
        ),
        compiler_params=pltpu.CompilerParams(
            dimension_semantics=("parallel", "arbitrary"),
            vmem_limit_bytes=vmem_limit,
        ),
    )(xin, w, slab, a_p)


# ---------------------------------------------------------------------------
# Parameter folding (do ONCE at load time) and input preparation (ONCE per graph)
# ---------------------------------------------------------------------------
def fold_params(p):
    """Fold eval-BN into conv, linear1 into conv#1, linear2 into linearO; pad to 128."""
    F = p["w1"].shape[0]
    H = p["wc"].shape[0]

    s = p["gamma"] * jax.lax.rsqrt(p["rv"] + BN_EPS)          # [1, H]
    wc_f = p["wc"] * s                                        # [H, H]
    bc_f = (p["bc"] - p["rm"]) * s + p["beta"]                # [1, H]
    w1c = p["w1"] @ wc_f                                      # [F, H]
    b1c = p["b1"] @ wc_f                                      # [1, H]
    w_out = p["w2"] @ p["wo"]                                 # [H, 1]
    b_out = p["b2"] @ p["wo"] + p["bo"]                       # [1, 1]

    FP = _round_up(F, 128)
    HP = _round_up(H, 128)

    def pad(w, r, c):
        return jnp.zeros((r, c), jnp.float32).at[:w.shape[0], :w.shape[1]].set(w)

    w1c_p = pad(w1c, FP, HP)
    wcf_p = pad(wc_f, HP, HP)

    slab = jnp.zeros((8, HP), jnp.float32)
    slab = slab.at[0, :H].set(b1c[0])          # b_in for layer 1
    slab = slab.at[1, :H].set(bc_f[0])         # BN-folded conv bias (both layers)
    slab = slab.at[2, :H].set(w_out[:, 0])     # (w2 @ wo)^T
    slab = slab.at[3, :].set(b_out[0, 0])      # b2 @ wo + bo (scalar, broadcast)

    return dict(w1c=w1c_p.astype(jnp.bfloat16),
                wcf=wcf_p.astype(jnp.bfloat16),
                slab=slab)


def prepare_inputs(x, a_hat, feat_pad):
    """Pad node/feature dims and cast to bf16 (hoisted out of the per-call path)."""
    n, f = x.shape
    npad = _pad_size(n)
    x_p = jnp.zeros((npad, feat_pad), jnp.bfloat16).at[:n, :f].set(x.astype(jnp.bfloat16))
    a_p = jnp.zeros((npad, npad), jnp.bfloat16).at[:n, :n].set(a_hat.astype(jnp.bfloat16))
    return x_p, a_p


def gcn_forward(x_p, a_p, folded, num_nodes):
    """Full forward from pre-padded bf16 inputs and pre-folded params."""
    npad = a_p.shape[0]
    tm, tk = _tiles_for_padded(npad)
    vmem_limit = _vmem_limit_bytes()

    # layer 1: linear1 ∘ dropout(id) ∘ conv ∘ BN (folded) ∘ LeakyReLU
    h1 = _prop_call(x_p, folded["w1c"], folded["slab"], a_p, tm, tk,
                    with_in_bias=True, with_head=False, vmem_limit=vmem_limit)
    # layer 2: shared conv ∘ BN (folded) ∘ LeakyReLU, then fused (linear2∘linearO)+sigmoid
    out = _prop_call(h1, folded["wcf"], folded["slab"], a_p, tm, tk,
                     with_in_bias=False, with_head=True, vmem_limit=vmem_limit)
    return out[0, :num_nodes].reshape(num_nodes, 1)   # match PyTorch [N, 1]


# ---------------------------------------------------------------------------
# Parameters / graph construction / references
# ---------------------------------------------------------------------------
def make_params(key, num_features, hidden):
    ks = jax.random.split(key, 5)
    # PyTorch Linear stores weight [out, in]; we pre-transpose to [in, out].
    w1 = jax.random.normal(ks[0], (num_features, hidden), jnp.float32) * 0.1
    b1 = jax.random.normal(ks[1], (1, hidden), jnp.float32) * 0.1
    wc = jax.random.normal(ks[2], (hidden, hidden), jnp.float32) * 0.1   # GCNConv lin W^T
    bc = jnp.zeros((1, hidden), jnp.float32)
    gamma = jnp.ones((1, hidden), jnp.float32)
    beta = jnp.zeros((1, hidden), jnp.float32)
    rm = jnp.zeros((1, hidden), jnp.float32)
    rv = jnp.ones((1, hidden), jnp.float32)
    w2 = jax.random.normal(ks[3], (hidden, hidden), jnp.float32) * 0.1
    b2 = jnp.zeros((1, hidden), jnp.float32)
    wo = jax.random.normal(ks[4], (hidden, 1), jnp.float32) * 0.1
    bo = jnp.zeros((1, 1), jnp.float32)
    return dict(w1=w1, b1=b1, wc=wc, bc=bc, gamma=gamma, beta=beta,
                rm=rm, rv=rv, w2=w2, b2=b2, wo=wo, bo=bo)


def build_a_hat(edge_index, num_nodes):
    """Dense GCN normalization: D^-1/2 (A + I) D^-1/2 (simple graph, no dup edges)."""
    src, dst = edge_index
    A = jnp.zeros((num_nodes, num_nodes), jnp.float32).at[src, dst].set(1.0)
    A = A + jnp.eye(num_nodes, dtype=jnp.float32)
    deg = A.sum(axis=1)
    dinv = 1.0 / jnp.sqrt(deg)
    return dinv[:, None] * A * dinv[None, :]


def reference_forward_f32(x, a_hat, p):
    """Plain-JAX f32 reference with the ORIGINAL (unfolded) op sequence."""
    h = x @ p["w1"] + p["b1"]
    for _ in range(2):
        h = a_hat @ (h @ p["wc"]) + p["bc"]
        h = (h - p["rm"]) / jnp.sqrt(p["rv"] + BN_EPS) * p["gamma"] + p["beta"]
        h = jnp.where(h > 0, h, LEAKY_SLOPE * h)
    h = h @ p["w2"] + p["b2"]
    o = h @ p["wo"] + p["bo"]
    return 1.0 / (1.0 + jnp.exp(-o))


def reference_forward_mirror(x_p, a_p, folded, num_nodes):
    """Plain-JAX reference mirroring the kernel's folded/padded bf16 numerics."""
    f32, bf16 = jnp.float32, jnp.bfloat16
    slab = folded["slab"]
    b1c, bcf = slab[0:1], slab[1:2]
    w_out, b_out = slab[2:3], slab[3:4, 0:1]
    hw = jnp.dot(x_p, folded["w1c"], preferred_element_type=f32) + b1c
    h = jnp.dot(a_p, hw.astype(bf16), preferred_element_type=f32) + bcf
    h = jnp.where(h > 0, h, LEAKY_SLOPE * h)
    hw = jnp.dot(h.astype(bf16), folded["wcf"], preferred_element_type=f32)
    h = jnp.dot(a_p, hw.astype(bf16), preferred_element_type=f32) + bcf
    h = jnp.where(h > 0, h, LEAKY_SLOPE * h)
    o = h @ w_out.T + b_out
    return (1.0 / (1.0 + jnp.exp(-o)))[:num_nodes]


if __name__ == "__main__":
    num_nodes = 16
    num_features = 12
    hidden = 32

    key = jax.random.PRNGKey(0)
    kx, kp = jax.random.split(key)
    x = jax.random.normal(kx, (num_nodes, num_features), jnp.float32)

    # Deterministic ring graph (both directions) as edge_index [2, E].
    idx = jnp.arange(num_nodes)
    src = jnp.concatenate([idx, (idx + 1) % num_nodes])
    dst = jnp.concatenate([(idx + 1) % num_nodes, idx])
    edge_index = jnp.stack([src, dst])

    a_hat = build_a_hat(edge_index, num_nodes)
    params = make_params(kp, num_features, hidden)

    folded = fold_params(params)                               # once, at load time
    x_p, a_p = prepare_inputs(x, a_hat, folded["w1c"].shape[0])  # once per graph

    fwd = jax.jit(gcn_forward, static_argnums=(3,))
    out = jax.block_until_ready(fwd(x_p, a_p, folded, num_nodes))
    assert out.shape == (num_nodes, 1)

    ref_mirror = reference_forward_mirror(x_p, a_p, folded, num_nodes)
    ref_f32 = reference_forward_f32(x, a_hat, params)

    # mirror: only accumulation-order / MXU rounding differences
    assert jnp.allclose(out, ref_mirror, atol=2e-2, rtol=0.0), "mismatch vs bf16 mirror ref"
    # unfolded f32: additionally carries bf16 quantization of operands
    assert jnp.allclose(out, ref_f32, atol=4e-2, rtol=0.0), "mismatch vs f32 unfolded ref"

    print("KERNEL_OK")
</pallas_src>

<mosaic_0001>
module attributes {stable_mosaic.version = 11 : i64} {
  func.func @kernel(%arg0: i32, %arg1: i32, %arg2: memref<128x128xbf16, #tpu.memory_space<vmem>>, %arg3: memref<128x128xbf16, #tpu.memory_space<vmem>>, %arg4: memref<8x128xf32, #tpu.memory_space<vmem>>, %arg5: memref<128x128xbf16, #tpu.memory_space<vmem>>, %arg6: memref<128x128xbf16, #tpu.memory_space<vmem>>, %arg7: memref<128x128xf32, #tpu.memory_space<vmem>>) attributes {dimension_semantics = [#tpu.dimension_semantics<parallel>, #tpu.dimension_semantics<arbitrary>], iteration_bounds = array<i64: 1, 1>, scalar_prefetch = 0 : i64, scratch_operands = 1 : i64, tpu.core_type = #tpu.core_type<tc>, window_params = [{pipeline_mode = #tpu.pipeline_mode<synchronous>, transform_indices = @transform_0, window_bounds = array<i64: 128, 128>}, {pipeline_mode = #tpu.pipeline_mode<synchronous>, transform_indices = @transform_1, window_bounds = array<i64: 128, 128>}, {pipeline_mode = #tpu.pipeline_mode<synchronous>, transform_indices = @transform_2, window_bounds = array<i64: 8, 128>}, {transform_indices = @transform_3, window_bounds = array<i64: 128, 128>}, {transform_indices = @transform_4, window_bounds = array<i64: 128, 128>}]} {
    %c0_i32 = arith.constant 0 : i32
    %0 = arith.cmpi eq, %arg1, %c0_i32 : i32
    %1 = arith.extui %0 : i1 to i32
    %c0_i32_0 = arith.constant 0 : i32
    %2 = arith.cmpi ne, %1, %c0_i32_0 : i32
    scf.if %2 {
      %cst_14 = arith.constant 0.000000e+00 : f32
      %21 = vector.broadcast %cst_14 : f32 to vector<128x128xf32>
      %c0_15 = arith.constant 0 : index
      %c0_16 = arith.constant 0 : index
      %22 = vector.load %arg7[%c0_15, %c0_16] : memref<128x128xf32, #tpu.memory_space<vmem>>, vector<128x128xf32>
      tpu.vector_store %arg7[%c0_15, %c0_16], %21 {strides = array<i32>} : memref<128x128xf32, #tpu.memory_space<vmem>>, vector<128x128xf32>,
    } else {
    }
    %c128_i32 = arith.constant 128 : i32
    %3 = arith.muli %arg1, %c128_i32 : i32
    %4 = tpu.assume_multiple %3, 128 : i32
    %5 = arith.index_cast %4 : i32 to index
    %c0 = arith.constant 0 : index
    %6 = vector.load %arg2[%5, %c0] : memref<128x128xbf16, #tpu.memory_space<vmem>>, vector<128x128xbf16>
    %c0_1 = arith.constant 0 : index
    %c0_2 = arith.constant 0 : index
    %7 = vector.load %arg3[%c0_1, %c0_2] : memref<128x128xbf16, #tpu.memory_space<vmem>>, vector<128x128xbf16>
    %cst = arith.constant dense<0.000000e+00> : vector<128x128xf32>
    %8 = tpu.matmul %6, %7, %cst {dimension_numbers = #tpu.dot_dimension_numbers<[1], [0], [0], [1], [0, 0, 1, 1], [], []>} : vector<128x128xbf16>, vector<128x128xbf16>, vector<128x128xf32> -> vector<128x128xf32>
    %c0_3 = arith.constant 0 : index
    %c0_4 = arith.constant 0 : index
    %9 = vector.load %arg4[%c0_3, %c0_4] : memref<8x128xf32, #tpu.memory_space<vmem>>, vector<1x128xf32>
    %10 = vector.broadcast %9 : vector<1x128xf32> to vector<128x128xf32>
    %11 = arith.addf %8, %10 : vector<128x128xf32>
    %c0_5 = arith.constant 0 : index
    %c0_6 = arith.constant 0 : index
    %12 = vector.load %arg7[%c0_5, %c0_6] : memref<128x128xf32, #tpu.memory_space<vmem>>, vector<128x128xf32>
    %c0_7 = arith.constant 0 : index
    %c0_8 = arith.constant 0 : index
    %13 = vector.load %arg5[%c0_7, %c0_8] : memref<128x128xbf16, #tpu.memory_space<vmem>>, vector<128x128xbf16>
    %14 = arith.truncf %11 : vector<128x128xf32> to vector<128x128xbf16>
    %cst_9 = arith.constant dense<0.000000e+00> : vector<128x128xf32>
    %15 = tpu.matmul %13, %14, %cst_9 {dimension_numbers = #tpu.dot_dimension_numbers<[1], [0], [0], [1], [0, 0, 1, 1], [], []>} : vector<128x128xbf16>, vector<128x128xbf16>, vector<128x128xf32> -> vector<128x128xf32>
    %16 = arith.addf %12, %15 : vector<128x128xf32>
    %c0_10 = arith.constant 0 : index
    %c0_11 = arith.constant 0 : index
    %17 = vector.load %arg7[%c0_10, %c0_11] : memref<128x128xf32, #tpu.memory_space<vmem>>, vector<128x128xf32>
    tpu.vector_store %arg7[%c0_10, %c0_11], %16 {strides = array<i32>} : memref<128x128xf32, #tpu.memory_space<vmem>>, vector<128x128xf32>,
    %c0_i32_12 = arith.constant 0 : i32
    %18 = arith.cmpi eq, %arg1, %c0_i32_12 : i32
    %19 = arith.extui %18 : i1 to i32
    %c0_i32_13 = arith.constant 0 : i32
    %20 = arith.cmpi ne, %19, %c0_i32_13 : i32
    scf.if %20 {
      %c0_14 = arith.constant 0 : index
      %c0_15 = arith.constant 0 : index
      %21 = vector.load %arg7[%c0_14, %c0_15] : memref<128x128xf32, #tpu.memory_space<vmem>>, vector<128x128xf32>
      %c1 = arith.constant 1 : index
      %c0_16 = arith.constant 0 : index
      %22 = vector.load %arg4[%c1, %c0_16] : memref<8x128xf32, #tpu.memory_space<vmem>>, vector<1x128xf32>
      %23 = vector.broadcast %22 : vector<1x128xf32> to vector<128x128xf32>
      %24 = arith.addf %21, %23 : vector<128x128xf32>
      %cst_17 = arith.constant 0.000000e+00 : f32
      %25 = vector.broadcast %cst_17 : f32 to vector<128x128xf32>
      %26 = arith.cmpf ogt, %24, %25 : vector<128x128xf32>
      %cst_18 = arith.constant 0.00999999977 : f32
      %27 = vector.broadcast %cst_18 : f32 to vector<128x128xf32>
      %28 = arith.mulf %27, %24 : vector<128x128xf32>
      %29 = arith.select %26, %24, %28 : vector<128x128xi1>, vector<128x128xf32>
      %30 = arith.truncf %29 : vector<128x128xf32> to vector<128x128xbf16>
      %c0_19 = arith.constant 0 : index
      %c0_20 = arith.constant 0 : index
      %31 = vector.load %arg6[%c0_19, %c0_20] : memref<128x128xbf16, #tpu.memory_space<vmem>>, vector<128x128xbf16>
      tpu.vector_store %arg6[%c0_19, %c0_20], %30 {strides = array<i32>} : memref<128x128xbf16, #tpu.memory_space<vmem>>, vector<128x128xbf16>,
    } else {
    }
    return
  }
  func.func @transform_0(%arg0: i32, %arg1: i32) -> (i32, i32) {
    %c0_i32 = arith.constant 0 : i32
    %c0_i32_0 = arith.constant 0 : i32
    %c0_i32_1 = arith.constant 0 : i32
    return %c0_i32, %c0_i32_0 : i32, i32
  }
  func.func @transform_1(%arg0: i32, %arg1: i32) -> (i32, i32) {
    %c0_i32 = arith.constant 0 : i32
    %c0_i32_0 = arith.constant 0 : i32
    %c0_i32_1 = arith.constant 0 : i32
    return %c0_i32, %c0_i32_0 : i32, i32
  }
  func.func @transform_2(%arg0: i32, %arg1: i32) -> (i32, i32) {
    %c0_i32 = arith.constant 0 : i32
    %c0_i32_0 = arith.constant 0 : i32
    %c0_i32_1 = arith.constant 0 : i32
    return %c0_i32, %c0_i32_0 : i32, i32
  }
  func.func @transform_3(%arg0: i32, %arg1: i32) -> (i32, i32) {
    %c0_i32 = arith.constant 0 : i32
    return %arg0, %arg1 : i32, i32
  }
  func.func @transform_4(%arg0: i32, %arg1: i32) -> (i32, i32) {
    %c0_i32 = arith.constant 0 : i32
    %c0_i32_0 = arith.constant 0 : i32
    return %arg0, %c0_i32 : i32, i32
  }
}

module attributes {stable_mosaic.version = 11 : i64} {
  func.func @kernel(%arg0: i32, %arg1: i32, %arg2: memref<128x128xbf16, #tpu.memory_space<vmem>>, %arg3: memref<128x128xbf16, #tpu.memory_space<vmem>>, %arg4: memref<8x128xf32, #tpu.memory_space<vmem>>, %arg5: memref<128x128xbf16, #tpu.memory_space<vmem>>, %arg6: memref<1x128xf32, #tpu.memory_space<vmem>>, %arg7: memref<128x128xf32, #tpu.memory_space<vmem>>) attributes {dimension_semantics = [#tpu.dimension_semantics<parallel>, #tpu.dimension_semantics<arbitrary>], iteration_bounds = array<i64: 1, 1>, scalar_prefetch = 0 : i64, scratch_operands = 1 : i64, tpu.core_type = #tpu.core_type<tc>, window_params = [{pipeline_mode = #tpu.pipeline_mode<synchronous>, transform_indices = @transform_0, window_bounds = array<i64: 128, 128>}, {pipeline_mode = #tpu.pipeline_mode<synchronous>, transform_indices = @transform_1, window_bounds = array<i64: 128, 128>}, {pipeline_mode = #tpu.pipeline_mode<synchronous>, transform_indices = @transform_2, window_bounds = array<i64: 8, 128>}, {transform_indices = @transform_3, window_bounds = array<i64: 128, 128>}, {transform_indices = @transform_4, window_bounds = array<i64: 1, 128>}]} {
    %c0_i32 = arith.constant 0 : i32
    %0 = arith.cmpi eq, %arg1, %c0_i32 : i32
    %1 = arith.extui %0 : i1 to i32
    %c0_i32_0 = arith.constant 0 : i32
    %2 = arith.cmpi ne, %1, %c0_i32_0 : i32
    scf.if %2 {
      %cst_12 = arith.constant 0.000000e+00 : f32
      %18 = vector.broadcast %cst_12 : f32 to vector<128x128xf32>
      %c0_13 = arith.constant 0 : index
      %c0_14 = arith.constant 0 : index
      %19 = vector.load %arg7[%c0_13, %c0_14] : memref<128x128xf32, #tpu.memory_space<vmem>>, vector<128x128xf32>
      tpu.vector_store %arg7[%c0_13, %c0_14], %18 {strides = array<i32>} : memref<128x128xf32, #tpu.memory_space<vmem>>, vector<128x128xf32>,
    } else {
    }
    %c128_i32 = arith.constant 128 : i32
    %3 = arith.muli %arg1, %c128_i32 : i32
    %4 = tpu.assume_multiple %3, 128 : i32
    %5 = arith.index_cast %4 : i32 to index
    %c0 = arith.constant 0 : index
    %6 = vector.load %arg2[%5, %c0] : memref<128x128xbf16, #tpu.memory_space<vmem>>, vector<128x128xbf16>
    %c0_1 = arith.constant 0 : index
    %c0_2 = arith.constant 0 : index
    %7 = vector.load %arg3[%c0_1, %c0_2] : memref<128x128xbf16, #tpu.memory_space<vmem>>, vector<128x128xbf16>
    %cst = arith.constant dense<0.000000e+00> : vector<128x128xf32>
    %8 = tpu.matmul %6, %7, %cst {dimension_numbers = #tpu.dot_dimension_numbers<[1], [0], [0], [1], [0, 0, 1, 1], [], []>} : vector<128x128xbf16>, vector<128x128xbf16>, vector<128x128xf32> -> vector<128x128xf32>
    %c0_3 = arith.constant 0 : index
    %c0_4 = arith.constant 0 : index
    %9 = vector.load %arg7[%c0_3, %c0_4] : memref<128x128xf32, #tpu.memory_space<vmem>>, vector<128x128xf32>
    %c0_5 = arith.constant 0 : index
    %c0_6 = arith.constant 0 : index
    %10 = vector.load %arg5[%c0_5, %c0_6] : memref<128x128xbf16, #tpu.memory_space<vmem>>, vector<128x128xbf16>
    %11 = arith.truncf %8 : vector<128x128xf32> to vector<128x128xbf16>
    %cst_7 = arith.constant dense<0.000000e+00> : vector<128x128xf32>
    %12 = tpu.matmul %10, %11, %cst_7 {dimension_numbers = #tpu.dot_dimension_numbers<[1], [0], [0], [1], [0, 0, 1, 1], [], []>} : vector<128x128xbf16>, vector<128x128xbf16>, vector<128x128xf32> -> vector<128x128xf32>
    %13 = arith.addf %9, %12 : vector<128x128xf32>
    %c0_8 = arith.constant 0 : index
    %c0_9 = arith.constant 0 : index
    %14 = vector.load %arg7[%c0_8, %c0_9] : memref<128x128xf32, #tpu.memory_space<vmem>>, vector<128x128xf32>
    tpu.vector_store %arg7[%c0_8, %c0_9], %13 {strides = array<i32>} : memref<128x128xf32, #tpu.memory_space<vmem>>, vector<128x128xf32>,
    %c0_i32_10 = arith.constant 0 : i32
    %15 = arith.cmpi eq, %arg1, %c0_i32_10 : i32
    %16 = arith.extui %15 : i1 to i32
    %c0_i32_11 = arith.constant 0 : i32
    %17 = arith.cmpi ne, %16, %c0_i32_11 : i32
    scf.if %17 {
      %c0_12 = arith.constant 0 : index
      %c0_13 = arith.constant 0 : index
      %18 = vector.load %arg7[%c0_12, %c0_13] : memref<128x128xf32, #tpu.memory_space<vmem>>, vector<128x128xf32>
      %c1 = arith.constant 1 : index
      %c0_14 = arith.constant 0 : index
      %19 = vector.load %arg4[%c1, %c0_14] : memref<8x128xf32, #tpu.memory_space<vmem>>, vector<1x128xf32>
      %20 = vector.broadcast %19 : vector<1x128xf32> to vector<128x128xf32>
      %21 = arith.addf %18, %20 : vector<128x128xf32>
      %cst_15 = arith.constant 0.000000e+00 : f32
      %22 = vector.broadcast %cst_15 : f32 to vector<128x128xf32>
      %23 = arith.cmpf ogt, %21, %22 : vector<128x128xf32>
      %cst_16 = arith.constant 0.00999999977 : f32
      %24 = vector.broadcast %cst_16 : f32 to vector<128x128xf32>
      %25 = arith.mulf %24, %21 : vector<128x128xf32>
      %26 = arith.select %23, %21, %25 : vector<128x128xi1>, vector<128x128xf32>
      %c2 = arith.constant 2 : index
      %c0_17 = arith.constant 0 : index
      %27 = vector.load %arg4[%c2, %c0_17] : memref<8x128xf32, #tpu.memory_space<vmem>>, vector<1x128xf32>
      %c3 = arith.constant 3 : index
      %c0_18 = arith.constant 0 : index
      %28 = vector.load %arg4[%c3, %c0_18] : memref<8x128xf32, #tpu.memory_space<vmem>>, vector<1x1xf32>
      %cst_19 = arith.constant dense<0.000000e+00> : vector<1x128xf32>
      %29 = tpu.matmul %27, %26, %cst_19 {dimension_numbers = #tpu.dot_dimension_numbers<[1], [1], [0], [0], [0, 0, 1, 0], [], []>} : vector<1x128xf32>, vector<128x128xf32>, vector<1x128xf32> -> vector<1x128xf32>
      %30 = vector.broadcast %28 : vector<1x1xf32> to vector<1x128xf32>
      %31 = arith.addf %29, %30 : vector<1x128xf32>
      %cst_20 = arith.constant 0.000000e+00 : f32
      %32 = vector.broadcast %cst_20 : f32 to vector<1x128xf32>
      %33 = arith.subf %32, %31 : vector<1x128xf32>
      %34 = math.exp %33 : vector<1x128xf32>
      %cst_21 = arith.constant 1.000000e+00 : f32
      %35 = vector.broadcast %cst_21 : f32 to vector<1x128xf32>
      %36 = arith.addf %35, %34 : vector<1x128xf32>
      %cst_22 = arith.constant 1.000000e+00 : f32
      %37 = vector.broadcast %cst_22 : f32 to vector<1x128xf32>
      %38 = arith.divf %37, %36 : vector<1x128xf32>
      %c0_23 = arith.constant 0 : index
      %c0_24 = arith.constant 0 : index
      %39 = vector.load %arg6[%c0_23, %c0_24] : memref<1x128xf32, #tpu.memory_space<vmem>>, vector<1x128xf32>
      tpu.vector_store %arg6[%c0_23, %c0_24], %38 {strides = array<i32>} : memref<1x128xf32, #tpu.memory_space<vmem>>, vector<1x128xf32>,
    } else {
    }
    return
  }
  func.func @transform_0(%arg0: i32, %arg1: i32) -> (i32, i32) {
    %c0_i32 = arith.constant 0 : i32
    %c0_i32_0 = arith.constant 0 : i32
    %c0_i32_1 = arith.constant 0 : i32
    return %c0_i32, %c0_i32_0 : i32, i32
  }
  func.func @transform_1(%arg0: i32, %arg1: i32) -> (i32, i32) {
    %c0_i32 = arith.constant 0 : i32
    %c0_i32_0 = arith.constant 0 : i32
    %c0_i32_1 = arith.constant 0 : i32
    return %c0_i32, %c0_i32_0 : i32, i32
  }
  func.func @transform_2(%arg0: i32, %arg1: i32) -> (i32, i32) {
    %c0_i32 = arith.constant 0 : i32
    %c0_i32_0 = arith.constant 0 : i32
    %c0_i32_1 = arith.constant 0 : i32
    return %c0_i32, %c0_i32_0 : i32, i32
  }
  func.func @transform_3(%arg0: i32, %arg1: i32) -> (i32, i32) {
    %c0_i32 = arith.constant 0 : i32
    return %arg0, %arg1 : i32, i32
  }
  func.func @transform_4(%arg0: i32, %arg1: i32) -> (i32, i32) {
    %c0_i32 = arith.constant 0 : i32
    %c0_i32_0 = arith.constant 0 : i32
    return %c0_i32, %arg0 : i32, i32
  }
}

</mosaic_0001>

<llo_original>
// kernel: gcn_forward.3
$region0: #{gcn_forward.3}
  #allocation0 [shape = 'u32[]', space=smem, size = 0x4, offset = 0x4, fixed_abs, tag = 'smem constant byte address 0x4 - core index']
  #allocation1 [shape = 'u32[72,128]{1,0:T(1,128)}', space=vmem, size = 0x9000, scoped, tag = 'internal scratch']
  #allocation2 [shape = 'f32[128,128]{1,0:T(8,128)}', space=vmem, size = 0x10000, scoped, tag = 'scratch operand']
  %s0 = inlined_call_operand.vmem [shape: bf16[128,128], index: 0, kind: input, shape index: {}]
  %s1 = inlined_call_operand.hbm [shape: bf16[128,128], index: 1, kind: input, shape index: {}]
  %s2 = inlined_call_operand.hbm [shape: f32[8,128], index: 2, kind: input, shape index: {}]
  %s3 = inlined_call_operand.hbm [shape: bf16[128,128], index: 3, kind: input, shape index: {}]
  %s4 = inlined_call_operand.vmem [shape: f32[1,128], index: 4, kind: output, shape index: {}]
  %s5 = sld [smem:[#allocation0]]
  $region46: #{gcn_forward.3} parent=0
    _
  %s7 = ssub.s32 1, %s5
  %s8 = scalar_select 0, %s7, %s5
  $region1: #{gcn_forward.3} parent=0
    #allocation3 [shape = 'u8[32768]{0}', space=vmem, size = 0x8000, scoped, tag = 'input window, operand 1, single buffered']
    #allocation4 [shape = 's32[1]{0}', space=sflag, size = 0x4, scoped, tag = 'scoped memory for gcn_forward.3']
    #allocation5 [shape = 'u8[4096]{0}', space=vmem, size = 0x1000, scoped, tag = 'input window, operand 2, single buffered']
    #allocation6 [shape = 's32[1]{0}', space=sflag, size = 0x4, scoped, tag = 'scoped memory for gcn_forward.3']
    #allocation7 [shape = 'u8[32768]{0}', space=vmem, size = 0x8000, scoped, tag = 'input window, operand 3, single buffered']
    %9 = vsyncpa [#allocation4], 0
    %10 = vsyncpa [#allocation6], 0
    // Predicated region
    $region2: #{gcn_forward.3} parent=1 // pred_check
      _
    $region3: #{gcn_forward.3} parent=1 // pred_check_branch
      %12 = sbr.rel (0) target = $region5
    $region4: #{gcn_forward.3} parent=1 // pred_region
      _
    $region5: #{gcn_forward.3} parent=1 // pred_fallthru
      _
    // Predicated region
    $region6: #{gcn_forward.3} parent=1 // pred_check
      _
    $region7: #{gcn_forward.3} parent=1 // pred_check_branch
      %14 = sbr.rel (0) target = $region9
    $region8: #{gcn_forward.3} parent=1 // pred_region
      %16 = vsyncadd [#allocation4], 0
      %s17 = sshll.u32 %s1, 4
      %s18 = int_to_ptr.hbm [resolvable:$true] %s17
      %s19 = sshll.u32 [#allocation3], 4
      %s20 = int_to_ptr.vmem [resolvable:$true] %s19
      %25 = dma.hbm_to_vmem [thread:$0]  %s18, 1024, %s20, [#allocation4], 64, 64, 4
    $region9: #{gcn_forward.3} parent=1 // pred_fallthru
      _
    // Predicated region
    $region10: #{gcn_forward.3} parent=1 // pred_check
      _
    $region11: #{gcn_forward.3} parent=1 // pred_check_branch
      %27 = sbr.rel (0) target = $region13
    $region12: #{gcn_forward.3} parent=1 // pred_region
      %29 = vsyncadd [#allocation6], 0
      %s31 = sshll.u32 %s2, 4
      %s32 = int_to_ptr.hbm [resolvable:$true] %s31
      %s33 = sshll.u32 [#allocation5], 4
      %s34 = int_to_ptr.vmem [resolvable:$true] %s33
      %36 = dma.hbm_to_vmem [thread:$0]  %s32, 128, %s34, [#allocation6]
    $region13: #{gcn_forward.3} parent=1 // pred_fallthru
      _
    // Predicated region
    $region14: #{gcn_forward.3} parent=1 // pred_check
      _
    $region15: #{gcn_forward.3} parent=1 // pred_check_branch
      %38 = sbr.rel (0) target = $region17
    $region16: #{gcn_forward.3} parent=1 // pred_region
      %40 = vsyncadd [#allocation6], 0
      %s41 = sshll.u32 %s3, 4
      %s42 = int_to_ptr.hbm [resolvable:$true] %s41
      %s43 = sshll.u32 [#allocation7], 4
      %s44 = int_to_ptr.vmem [resolvable:$true] %s43
      %49 = dma.hbm_to_vmem [thread:$0]  %s42, 1024, %s44, [#allocation6], 64, 64, 4
    $region17: #{gcn_forward.3} parent=1 // pred_fallthru
      _
    // Predicated region
    $region18: #{gcn_forward.3} parent=1 // pred_check
      _
    $region19: #{gcn_forward.3} parent=1 // pred_check_branch
      %51 = sbr.rel (0) target = $region21
    $region20: #{gcn_forward.3} parent=1 // pred_region
      %53 = dma.done [#allocation4], 1024
    $region21: #{gcn_forward.3} parent=1 // pred_fallthru
      _
    // Predicated region
    $region22: #{gcn_forward.3} parent=1 // pred_check
      _
    $region23: #{gcn_forward.3} parent=1 // pred_check_branch
      %55 = sbr.rel (0) target = $region25
    $region24: #{gcn_forward.3} parent=1 // pred_region
      %57 = dma.done [#allocation6], 128
    $region25: #{gcn_forward.3} parent=1 // pred_fallthru
      _
    // Predicated region
    $region26: #{gcn_forward.3} parent=1 // pred_check
      _
    $region27: #{gcn_forward.3} parent=1 // pred_check_branch
      %59 = sbr.rel (0) target = $region29
    $region28: #{gcn_forward.3} parent=1 // pred_region
      %61 = dma.done [#allocation6], 1024
    $region29: #{gcn_forward.3} parent=1 // pred_fallthru
      _
    %p62 = scmp.eq.s32.totalorder 0, 0
    // Predicated region
    $region30: #{gcn_forward.3} parent=1 // pred_check
      %p63 = pneg %p62
    $region31: #{gcn_forward.3} parent=1 // pred_check_branch
      %65 = sbr.rel (%p63) target = $region33
    $region32: #{gcn_forward.3} parent=1 // pred_region
      %66 = vst [vmem:[#allocation2] sm:$0xff] 0.0
      %67 = vst [vmem:[#allocation2 + $0x8] sm:$0xff] 0.0
      %68 = vst [vmem:[#allocation2 + $0x10] sm:$0xff] 0.0
      %69 = vst [vmem:[#allocation2 + $0x18] sm:$0xff] 0.0
      %70 = vst [vmem:[#allocation2 + $0x20] sm:$0xff] 0.0
      %71 = vst [vmem:[#allocation2 + $0x28] sm:$0xff] 0.0
      %72 = vst [vmem:[#allocation2 + $0x30] sm:$0xff] 0.0
      %73 = vst [vmem:[#allocation2 + $0x38] sm:$0xff] 0.0
      %74 = vst [vmem:[#allocation2 + $0x40] sm:$0xff] 0.0
      %75 = vst [vmem:[#allocation2 + $0x48] sm:$0xff] 0.0
      %76 = vst [vmem:[#allocation2 + $0x50] sm:$0xff] 0.0
      %77 = vst [vmem:[#allocation2 + $0x58] sm:$0xff] 0.0
      %78 = vst [vmem:[#allocation2 + $0x60] sm:$0xff] 0.0
      %79 = vst [vmem:[#allocation2 + $0x68] sm:$0xff] 0.0
      %80 = vst [vmem:[#allocation2 + $0x70] sm:$0xff] 0.0
      %81 = vst [vmem:[#allocation2 + $0x78] sm:$0xff] 0.0
    $region33: #{gcn_forward.3} parent=1 // pred_fallthru
      _
    %s82 = smul.u32 0, 128
    %s83 = sshra.s32 %s82, 3
    %s84 = sand.u32 %s82, 7
    %s85 = smul.addr %s83, 4
    %s86 = scalar_lea.vmem %s0, %s85
    %v87 = vld [vmem:[%s86] sm:$0xf]
    %v88 = vld [vmem:[%s86 + $0x4] sm:$0xf]
    %v89 = vld [vmem:[%s86 + $0x8] sm:$0xf]
    %v90 = vld [vmem:[%s86 + $0xc] sm:$0xf]
    %v91 = vld [vmem:[%s86 + $0x10] sm:$0xf]
    %v92 = vld [vmem:[%s86 + $0x14] sm:$0xf]
    %v93 = vld [vmem:[%s86 + $0x18] sm:$0xf]
    %v94 = vld [vmem:[%s86 + $0x1c] sm:$0xf]
    %v95 = vld [vmem:[%s86 + $0x20] sm:$0xf]
    %v96 = vld [vmem:[%s86 + $0x24] sm:$0xf]
    %v97 = vld [vmem:[%s86 + $0x28] sm:$0xf]
    %v98 = vld [vmem:[%s86 + $0x2c] sm:$0xf]
    %v99 = vld [vmem:[%s86 + $0x30] sm:$0xf]
    %v100 = vld [vmem:[%s86 + $0x34] sm:$0xf]
    %v101 = vld [vmem:[%s86 + $0x38] sm:$0xf]
    %v102 = vld [vmem:[%s86 + $0x3c] sm:$0xf]
    %v103 = vld [vmem:[#allocation3] sm:$0xf]
    %v104 = vld [vmem:[#allocation3 + $0x4] sm:$0xf]
    %v105 = vld [vmem:[#allocation3 + $0x8] sm:$0xf]
    %v106 = vld [vmem:[#allocation3 + $0xc] sm:$0xf]
    %v107 = vld [vmem:[#allocation3 + $0x10] sm:$0xf]
    %v108 = vld [vmem:[#allocation3 + $0x14] sm:$0xf]
    %v109 = vld [vmem:[#allocation3 + $0x18] sm:$0xf]
    %v110 = vld [vmem:[#allocation3 + $0x1c] sm:$0xf]
    %v111 = vld [vmem:[#allocation3 + $0x20] sm:$0xf]
    %v112 = vld [vmem:[#allocation3 + $0x24] sm:$0xf]
    %v113 = vld [vmem:[#allocation3 + $0x28] sm:$0xf]
    %v114 = vld [vmem:[#allocation3 + $0x2c] sm:$0xf]
    %v115 = vld [vmem:[#allocation3 + $0x30] sm:$0xf]
    %v116 = vld [vmem:[#allocation3 + $0x34] sm:$0xf]
    %v117 = vld [vmem:[#allocation3 + $0x38] sm:$0xf]
    %v118 = vld [vmem:[#allocation3 + $0x3c] sm:$0xf]
    %v135 = vunpack.c.l.b16 %v87
    %v136 = vunpack.c.l.b16 %v88
    %v137 = vunpack.c.l.b16 %v89
    %v138 = vunpack.c.l.b16 %v90
    %v139 = vunpack.c.l.b16 %v91
    %v140 = vunpack.c.l.b16 %v92
    %v141 = vunpack.c.l.b16 %v93
    %v142 = vunpack.c.l.b16 %v94
    %v143 = vunpack.c.l.b16 %v95
    %v144 = vunpack.c.l.b16 %v96
    %v145 = vunpack.c.l.b16 %v97
    %v146 = vunpack.c.l.b16 %v98
    %v147 = vunpack.c.l.b16 %v99
    %v148 = vunpack.c.l.b16 %v100
    %v149 = vunpack.c.l.b16 %v101
    %v150 = vunpack.c.l.b16 %v102
    %v151 = vpack.c.b16 %v136, %v135
    %v152 = vpack.c.b16 %v138, %v137
    %v153 = vpack.c.b16 %v140, %v139
    %v154 = vpack.c.b16 %v142, %v141
    %v155 = vpack.c.b16 %v144, %v143
    %v156 = vpack.c.b16 %v146, %v145
    %v157 = vpack.c.b16 %v148, %v147
    %v158 = vpack.c.b16 %v150, %v149
    %v183 = vunpack.c.l.b16 %v103
    %v184 = vunpack.c.l.b16 %v104
    %v185 = vunpack.c.l.b16 %v105
    %v186 = vunpack.c.l.b16 %v106
    %v187 = vunpack.c.l.b16 %v107
    %v188 = vunpack.c.l.b16 %v108
    %v189 = vunpack.c.l.b16 %v109
    %v190 = vunpack.c.l.b16 %v110
    %v191 = vunpack.c.l.b16 %v111
    %v192 = vunpack.c.l.b16 %v112
    %v193 = vunpack.c.l.b16 %v113
    %v194 = vunpack.c.l.b16 %v114
    %v195 = vunpack.c.l.b16 %v115
    %v196 = vunpack.c.l.b16 %v116
    %v197 = vunpack.c.l.b16 %v117
    %v198 = vunpack.c.l.b16 %v118
    %v199 = vpack.c.b16 %v184, %v183
    %v200 = vpack.c.b16 %v186, %v185
    %v201 = vpack.c.b16 %v188, %v187
    %v202 = vpack.c.b16 %v190, %v189
    %v203 = vpack.c.b16 %v192, %v191
    %v204 = vpack.c.b16 %v194, %v193
    %v205 = vpack.c.b16 %v196, %v195
    %v206 = vpack.c.b16 %v198, %v197
    %215 = vmatpush.bf16.msra.mxu0 %v206
    %216 = vmatpush.bf16.msra.mxu0 %v205
    %217 = vmatpush.bf16.msra.mxu0 %v204
    %218 = vmatpush.bf16.msra.mxu0 %v203
    %219 = vmatpush.bf16.msra.mxu0 %v202
    %220 = vmatpush.bf16.msra.mxu0 %v201
    %221 = vmatpush.bf16.msra.mxu0 %v200
    %222 = vmatpush.bf16.msra.mxu0 %v199
    %223 = vmatmul.bf16.gmra.mxu0 %v151
    %v224 = vpop.f32.mrf.mxu0
    %v225 = vadd.f32 0.0, %v224
    %v226 = vpop.f32.mrf.mxu0
    %v227 = vadd.f32 0.0, %v226
    %228 = vmatmul.bf16.gmra.mxu0 %v152
    %v229 = vpop.f32.mrf.mxu0
    %v230 = vadd.f32 0.0, %v229
    %v231 = vpop.f32.mrf.mxu0
    %v232 = vadd.f32 0.0, %v231
    %233 = vmatmul.bf16.gmra.mxu0 %v153
    %v234 = vpop.f32.mrf.mxu0
    %v235 = vadd.f32 0.0, %v234
    %v236 = vpop.f32.mrf.mxu0
    %v237 = vadd.f32 0.0, %v236
    %238 = vmatmul.bf16.gmra.mxu0 %v154
    %v239 = vpop.f32.mrf.mxu0
    %v240 = vadd.f32 0.0, %v239
    %v241 = vpop.f32.mrf.mxu0
    %v242 = vadd.f32 0.0, %v241
    %243 = vmatmul.bf16.gmra.mxu0 %v155
    %v244 = vpop.f32.mrf.mxu0
    %v245 = vadd.f32 0.0, %v244
    %v246 = vpop.f32.mrf.mxu0
    %v247 = vadd.f32 0.0, %v246
    %248 = vmatmul.bf16.gmra.mxu0 %v156
    %v249 = vpop.f32.mrf.mxu0
    %v250 = vadd.f32 0.0, %v249
    %v251 = vpop.f32.mrf.mxu0
    %v252 = vadd.f32 0.0, %v251
    %253 = vmatmul.bf16.gmra.mxu0 %v157
    %v254 = vpop.f32.mrf.mxu0
    %v255 = vadd.f32 0.0, %v254
    %v256 = vpop.f32.mrf.mxu0
    %v257 = vadd.f32 0.0, %v256
    %258 = vmatmul.bf16.gmra.mxu0 %v158
    %v259 = vpop.f32.mrf.mxu0
    %v260 = vadd.f32 0.0, %v259
    %v261 = vpop.f32.mrf.mxu0
    %v262 = vadd.f32 0.0, %v261
    %263 = vdwg.mxu0
    %v264 = vld [vmem:[#allocation2] sm:$0xff]
    %v265 = vld [vmem:[#allocation2 + $0x8] sm:$0xff]
    %v266 = vld [vmem:[#allocation2 + $0x10] sm:$0xff]
    %v267 = vld [vmem:[#allocation2 + $0x18] sm:$0xff]
    %v268 = vld [vmem:[#allocation2 + $0x20] sm:$0xff]
    %v269 = vld [vmem:[#allocation2 + $0x28] sm:$0xff]
    %v270 = vld [vmem:[#allocation2 + $0x30] sm:$0xff]
    %v271 = vld [vmem:[#allocation2 + $0x38] sm:$0xff]
    %v272 = vld [vmem:[#allocation2 + $0x40] sm:$0xff]
    %v273 = vld [vmem:[#allocation2 + $0x48] sm:$0xff]
    %v274 = vld [vmem:[#allocation2 + $0x50] sm:$0xff]
    %v275 = vld [vmem:[#allocation2 + $0x58] sm:$0xff]
    %v276 = vld [vmem:[#allocation2 + $0x60] sm:$0xff]
    %v277 = vld [vmem:[#allocation2 + $0x68] sm:$0xff]
    %v278 = vld [vmem:[#allocation2 + $0x70] sm:$0xff]
    %v279 = vld [vmem:[#allocation2 + $0x78] sm:$0xff]
    %v280 = vld [vmem:[#allocation7] sm:$0xf]
    %v281 = vld [vmem:[#allocation7 + $0x4] sm:$0xf]
    %v282 = vld [vmem:[#allocation7 + $0x8] sm:$0xf]
    %v283 = vld [vmem:[#allocation7 + $0xc] sm:$0xf]
    %v284 = vld [vmem:[#allocation7 + $0x10] sm:$0xf]
    %v285 = vld [vmem:[#allocation7 + $0x14] sm:$0xf]
    %v286 = vld [vmem:[#allocation7 + $0x18] sm:$0xf]
    %v287 = vld [vmem:[#allocation7 + $0x1c] sm:$0xf]
    %v288 = vld [vmem:[#allocation7 + $0x20] sm:$0xf]
    %v289 = vld [vmem:[#allocation7 + $0x24] sm:$0xf]
    %v290 = vld [vmem:[#allocation7 + $0x28] sm:$0xf]
    %v291 = vld [vmem:[#allocation7 + $0x2c] sm:$0xf]
    %v292 = vld [vmem:[#allocation7 + $0x30] sm:$0xf]
    %v293 = vld [vmem:[#allocation7 + $0x34] sm:$0xf]
    %v294 = vld [vmem:[#allocation7 + $0x38] sm:$0xf]
    %v295 = vld [vmem:[#allocation7 + $0x3c] sm:$0xf]
    %v296 = vpack.c.bf16 %v227, %v225
    %v297 = vpack.c.bf16 %v232, %v230
    %v298 = vpack.c.bf16 %v237, %v235
    %v299 = vpack.c.bf16 %v242, %v240
    %v300 = vpack.c.bf16 %v247, %v245
    %v301 = vpack.c.bf16 %v252, %v250
    %v302 = vpack.c.bf16 %v257, %v255
    %v303 = vpack.c.bf16 %v262, %v260
    %v320 = vunpack.c.l.b16 %v280
    %v321 = vunpack.c.l.b16 %v281
    %v322 = vunpack.c.l.b16 %v282
    %v323 = vunpack.c.l.b16 %v283
    %v324 = vunpack.c.l.b16 %v284
    %v325 = vunpack.c.l.b16 %v285
    %v326 = vunpack.c.l.b16 %v286
    %v327 = vunpack.c.l.b16 %v287
    %v328 = vunpack.c.l.b16 %v288
    %v329 = vunpack.c.l.b16 %v289
    %v330 = vunpack.c.l.b16 %v290
    %v331 = vunpack.c.l.b16 %v291
    %v332 = vunpack.c.l.b16 %v292
    %v333 = vunpack.c.l.b16 %v293
    %v334 = vunpack.c.l.b16 %v294
    %v335 = vunpack.c.l.b16 %v295
    %v336 = vpack.c.b16 %v321, %v320
    %v337 = vpack.c.b16 %v323, %v322
    %v338 = vpack.c.b16 %v325, %v324
    %v339 = vpack.c.b16 %v327, %v326
    %v340 = vpack.c.b16 %v329, %v328
    %v341 = vpack.c.b16 %v331, %v330
    %v342 = vpack.c.b16 %v333, %v332
    %v343 = vpack.c.b16 %v335, %v334
    %352 = vmatpush.bf16.msra.mxu0 %v303
    %353 = vmatpush.bf16.msra.mxu0 %v302
    %354 = vmatpush.bf16.msra.mxu0 %v301
    %355 = vmatpush.bf16.msra.mxu0 %v300
    %356 = vmatpush.bf16.msra.mxu0 %v299
    %357 = vmatpush.bf16.msra.mxu0 %v298
    %358 = vmatpush.bf16.msra.mxu0 %v297
    %359 = vmatpush.bf16.msra.mxu0 %v296
    %360 = vmatmul.bf16.gmra.mxu0 %v336
    %v361 = vpop.f32.mrf.mxu0
    %v362 = vadd.f32 0.0, %v361
    %v363 = vpop.f32.mrf.mxu0
    %v364 = vadd.f32 0.0, %v363
    %365 = vmatmul.bf16.gmra.mxu0 %v337
    %v366 = vpop.f32.mrf.mxu0
    %v367 = vadd.f32 0.0, %v366
    %v368 = vpop.f32.mrf.mxu0
    %v369 = vadd.f32 0.0, %v368
    %370 = vmatmul.bf16.gmra.mxu0 %v338
    %v371 = vpop.f32.mrf.mxu0
    %v372 = vadd.f32 0.0, %v371
    %v373 = vpop.f32.mrf.mxu0
    %v374 = vadd.f32 0.0, %v373
    %375 = vmatmul.bf16.gmra.mxu0 %v339
    %v376 = vpop.f32.mrf.mxu0
    %v377 = vadd.f32 0.0, %v376
    %v378 = vpop.f32.mrf.mxu0
    %v379 = vadd.f32 0.0, %v378
    %380 = vmatmul.bf16.gmra.mxu0 %v340
    %v381 = vpop.f32.mrf.mxu0
    %v382 = vadd.f32 0.0, %v381
    %v383 = vpop.f32.mrf.mxu0
    %v384 = vadd.f32 0.0, %v383
    %385 = vmatmul.bf16.gmra.mxu0 %v341
    %v386 = vpop.f32.mrf.mxu0
    %v387 = vadd.f32 0.0, %v386
    %v388 = vpop.f32.mrf.mxu0
    %v389 = vadd.f32 0.0, %v388
    %390 = vmatmul.bf16.gmra.mxu0 %v342
    %v391 = vpop.f32.mrf.mxu0
    %v392 = vadd.f32 0.0, %v391
    %v393 = vpop.f32.mrf.mxu0
    %v394 = vadd.f32 0.0, %v393
    %395 = vmatmul.bf16.gmra.mxu0 %v343
    %v396 = vpop.f32.mrf.mxu0
    %v397 = vadd.f32 0.0, %v396
    %v398 = vpop.f32.mrf.mxu0
    %v399 = vadd.f32 0.0, %v398
    %400 = vdwg.mxu0
    %v401 = vadd.f32 %v264, %v362
    %v402 = vadd.f32 %v265, %v364
    %v403 = vadd.f32 %v266, %v367
    %v404 = vadd.f32 %v267, %v369
    %v405 = vadd.f32 %v268, %v372
    %v406 = vadd.f32 %v269, %v374
    %v407 = vadd.f32 %v270, %v377
    %v408 = vadd.f32 %v271, %v379
    %v409 = vadd.f32 %v272, %v382
    %v410 = vadd.f32 %v273, %v384
    %v411 = vadd.f32 %v274, %v387
    %v412 = vadd.f32 %v275, %v389
    %v413 = vadd.f32 %v276, %v392
    %v414 = vadd.f32 %v277, %v394
    %v415 = vadd.f32 %v278, %v397
    %v416 = vadd.f32 %v279, %v399
    %417 = vst [vmem:[#allocation2] sm:$0xff] %v401
    %418 = vst [vmem:[#allocation2 + $0x8] sm:$0xff] %v402
    %419 = vst [vmem:[#allocation2 + $0x10] sm:$0xff] %v403
    %420 = vst [vmem:[#allocation2 + $0x18] sm:$0xff] %v404
    %421 = vst [vmem:[#allocation2 + $0x20] sm:$0xff] %v405
    %422 = vst [vmem:[#allocation2 + $0x28] sm:$0xff] %v406
    %423 = vst [vmem:[#allocation2 + $0x30] sm:$0xff] %v407
    %424 = vst [vmem:[#allocation2 + $0x38] sm:$0xff] %v408
    %425 = vst [vmem:[#allocation2 + $0x40] sm:$0xff] %v409
    %426 = vst [vmem:[#allocation2 + $0x48] sm:$0xff] %v410
    %427 = vst [vmem:[#allocation2 + $0x50] sm:$0xff] %v411
    %428 = vst [vmem:[#allocation2 + $0x58] sm:$0xff] %v412
    %429 = vst [vmem:[#allocation2 + $0x60] sm:$0xff] %v413
    %430 = vst [vmem:[#allocation2 + $0x68] sm:$0xff] %v414
    %431 = vst [vmem:[#allocation2 + $0x70] sm:$0xff] %v415
    %432 = vst [vmem:[#allocation2 + $0x78] sm:$0xff] %v416
    // Predicated region
    $region34: #{gcn_forward.3} parent=1 // pred_check
      %p433 = pneg %p62
    $region35: #{gcn_forward.3} parent=1 // pred_check_branch
      %435 = sbr.rel (%p433) target = $region37
    $region36: #{gcn_forward.3} parent=1 // pred_region
      %v436 = vld [vmem:[#allocation2] sm:$0xff]
      %v437 = vld [vmem:[#allocation2 + $0x8] sm:$0xff]
      %v438 = vld [vmem:[#allocation2 + $0x10] sm:$0xff]
      %v439 = vld [vmem:[#allocation2 + $0x18] sm:$0xff]
      %v440 = vld [vmem:[#allocation2 + $0x20] sm:$0xff]
      %v441 = vld [vmem:[#allocation2 + $0x28] sm:$0xff]
      %v442 = vld [vmem:[#allocation2 + $0x30] sm:$0xff]
      %v443 = vld [vmem:[#allocation2 + $0x38] sm:$0xff]
      %v444 = vld [vmem:[#allocation2 + $0x40] sm:$0xff]
      %v445 = vld [vmem:[#allocation2 + $0x48] sm:$0xff]
      %v446 = vld [vmem:[#allocation2 + $0x50] sm:$0xff]
      %v447 = vld [vmem:[#allocation2 + $0x58] sm:$0xff]
      %v448 = vld [vmem:[#allocation2 + $0x60] sm:$0xff]
      %v449 = vld [vmem:[#allocation2 + $0x68] sm:$0xff]
      %v450 = vld [vmem:[#allocation2 + $0x70] sm:$0xff]
      %v451 = vld [vmem:[#allocation2 + $0x78] sm:$0xff]
      %v452 = vld [vmem:[#allocation5 + $0x1] sm:$0x1]
      %v453 = vperm.slane %v452, 0
      %v454 = vadd.f32 %v436, %v453
      %v455 = vadd.f32 %v437, %v453
      %v456 = vadd.f32 %v438, %v453
      %v457 = vadd.f32 %v439, %v453
      %v458 = vadd.f32 %v440, %v453
      %v459 = vadd.f32 %v441, %v453
      %v460 = vadd.f32 %v442, %v453
      %v461 = vadd.f32 %v443, %v453
      %v462 = vadd.f32 %v444, %v453
      %v463 = vadd.f32 %v445, %v453
      %v464 = vadd.f32 %v446, %v453
      %v465 = vadd.f32 %v447, %v453
      %v466 = vadd.f32 %v448, %v453
      %v467 = vadd.f32 %v449, %v453
      %v468 = vadd.f32 %v450, %v453
      %v469 = vadd.f32 %v451, %v453
      %vm470 = vcmp.gt.f32.partialorder %v454, 0.0
      %vm471 = vcmp.gt.f32.partialorder %v455, 0.0
      %vm472 = vcmp.gt.f32.partialorder %v456, 0.0
      %vm473 = vcmp.gt.f32.partialorder %v457, 0.0
      %vm474 = vcmp.gt.f32.partialorder %v458, 0.0
      %vm475 = vcmp.gt.f32.partialorder %v459, 0.0
      %vm476 = vcmp.gt.f32.partialorder %v460, 0.0
      %vm477 = vcmp.gt.f32.partialorder %v461, 0.0
      %vm478 = vcmp.gt.f32.partialorder %v462, 0.0
      %vm479 = vcmp.gt.f32.partialorder %v463, 0.0
      %vm480 = vcmp.gt.f32.partialorder %v464, 0.0
      %vm481 = vcmp.gt.f32.partialorder %v465, 0.0
      %vm482 = vcmp.gt.f32.partialorder %v466, 0.0
      %vm483 = vcmp.gt.f32.partialorder %v467, 0.0
      %vm484 = vcmp.gt.f32.partialorder %v468, 0.0
      %vm485 = vcmp.gt.f32.partialorder %v469, 0.0
      %v486 = vmul.f32 %v454, 0.01
      %v487 = vmul.f32 %v455, 0.01
      %v488 = vmul.f32 %v456, 0.01
      %v489 = vmul.f32 %v457, 0.01
      %v490 = vmul.f32 %v458, 0.01
      %v491 = vmul.f32 %v459, 0.01
      %v492 = vmul.f32 %v460, 0.01
      %v493 = vmul.f32 %v461, 0.01
      %v494 = vmul.f32 %v462, 0.01
      %v495 = vmul.f32 %v463, 0.01
      %v496 = vmul.f32 %v464, 0.01
      %v497 = vmul.f32 %v465, 0.01
      %v498 = vmul.f32 %v466, 0.01
      %v499 = vmul.f32 %v467, 0.01
      %v500 = vmul.f32 %v468, 0.01
      %v501 = vmul.f32 %v469, 0.01
      %v502 = vsel %vm470, %v454, %v486
      %v503 = vsel %vm471, %v455, %v487
      %v504 = vsel %vm472, %v456, %v488
      %v505 = vsel %vm473, %v457, %v489
      %v506 = vsel %vm474, %v458, %v490
      %v507 = vsel %vm475, %v459, %v491
      %v508 = vsel %vm476, %v460, %v492
      %v509 = vsel %vm477, %v461, %v493
      %v510 = vsel %vm478, %v462, %v494
      %v511 = vsel %vm479, %v463, %v495
      %v512 = vsel %vm480, %v464, %v496
      %v513 = vsel %vm481, %v465, %v497
      %v514 = vsel %vm482, %v466, %v498
      %v515 = vsel %vm483, %v467, %v499
      %v516 = vsel %vm484, %v468, %v500
      %v517 = vsel %vm485, %v469, %v501
      %v518 = vld [vmem:[#allocation5 + $0x2] sm:$0x1]
      %v519 = vld [vmem:[#allocation5 + $0x3] sm:$0x1]
      %521 = vset.pattern.permute.xlu0 0
      %522 = vperm.xlu0 %521, %v519
      %v523 = vpop.permute.xlu0 %522
      %525 = vmatpush.xpose.msra.mxu0 %v517
      %526 = vmatpush.xpose.msra.mxu0 %v516
      %527 = vmatpush.xpose.msra.mxu0 %v515
      %528 = vmatpush.xpose.msra.mxu0 %v514
      %529 = vmatpush.xpose.msra.mxu0 %v513
      %530 = vmatpush.xpose.msra.mxu0 %v512
      %531 = vmatpush.xpose.msra.mxu0 %v511
      %532 = vmatpush.xpose.msra.mxu0 %v510
      %533 = vmatpush.xpose.msra.mxu0 %v509
      %534 = vmatpush.xpose.msra.mxu0 %v508
      %535 = vmatpush.xpose.msra.mxu0 %v507
      %536 = vmatpush.xpose.msra.mxu0 %v506
      %537 = vmatpush.xpose.msra.mxu0 %v505
      %538 = vmatpush.xpose.msra.mxu0 %v504
      %539 = vmatpush.xpose.msra.mxu0 %v503
      %540 = vmatpush.xpose.msra.mxu0 %v502
      %541 = vmatmul.f32.gmra.mxu0 %v518
      %v542 = vpop.f32.mrf.mxu0
      %v543 = vadd.f32 %v523, %v542
      %544 = vdwg.mxu0
      %v545 = vsub.f32 0.0, %v543
      %v546 = vmul.f32 %v545, 1.442695
      %v547 = vpow.pop %v546
      %v548 = vadd.f32 %v547, 1.0
      %v549 = vrcp.pop %v548
      %v550 = vmul.f32 %v548, %v549
      %v551 = vsub.f32 1.0, %v550
      %v552 = vmul.f32 %v549, %v551
      %v553 = vadd.f32 %v549, %v552
      %vm554 = vweird.f32 %v548
      %vm555 = vweird.f32 %v549
      %vm556 = vmor %vm554, %vm555
      %v557 = vsel %vm556, %v549, %v553
      %v558 = vand.u32 2147483647, %v548
      %vm559 = vcmp.eq.f32.partialorder %v558, 8.507059e+37
      %v560 = vand.u32 %v548, 2147483648
      %v561 = vor.u32 1.1754944e-38, %v560
      %v562 = vsel %vm559, %v561, %v557
      %v563 = vmul.f32 1.0, %v562
      %564 = vst [vmem:[%s4] sm:$0x1] %v563
    $region37: #{gcn_forward.3} parent=1 // pred_fallthru
      _
    // Predicated region
    $region38: #{gcn_forward.3} parent=1 // pred_check
      _
    $region39: #{gcn_forward.3} parent=1 // pred_check_branch
      %566 = sbr.rel (0) target = $region41
    $region40: #{gcn_forward.3} parent=1 // pred_region
      _
    $region41: #{gcn_forward.3} parent=1 // pred_fallthru
      _
    // Predicated region
    $region42: #{gcn_forward.3} parent=1 // pred_check
      _
    $region43: #{gcn_forward.3} parent=1 // pred_check_branch
      %568 = sbr.rel (0) target = $region45
    $region44: #{gcn_forward.3} parent=1 // pred_region
      _
    $region45: #{gcn_forward.3} parent=1 // pred_fallthru
      _
    %569 = vsyncpa [#allocation4], 1
    %570 = vsyncpa [#allocation6], 1

// kernel: gcn_forward.2
$region0: #{gcn_forward.2}
  #allocation0 [shape = 'u32[]', space=smem, size = 0x4, offset = 0x4, fixed_abs, tag = 'smem constant byte address 0x4 - core index']
  #allocation1 [shape = 'u32[72,128]{1,0:T(1,128)}', space=vmem, size = 0x9000, scoped, tag = 'internal scratch']
  #allocation2 [shape = 'f32[128,128]{1,0:T(8,128)}', space=vmem, size = 0x10000, scoped, tag = 'scratch operand']
  %s0 = inlined_call_operand.hbm [shape: bf16[128,128], index: 0, kind: input, shape index: {}]
  %s1 = inlined_call_operand.hbm [shape: bf16[128,128], index: 1, kind: input, shape index: {}]
  %s2 = inlined_call_operand.hbm [shape: f32[8,128], index: 2, kind: input, shape index: {}]
  %s3 = inlined_call_operand.hbm [shape: bf16[128,128], index: 3, kind: input, shape index: {}]
  %s4 = inlined_call_operand.vmem [shape: bf16[128,128], index: 4, kind: output, shape index: {}]
  %s5 = sld [smem:[#allocation0]]
  $region50: #{gcn_forward.2} parent=0
    _
  %s7 = ssub.s32 1, %s5
  %s8 = scalar_select 0, %s7, %s5
  $region1: #{gcn_forward.2} parent=0
    #allocation3 [shape = 'u8[32768]{0}', space=vmem, size = 0x8000, scoped, tag = 'input window, operand 0, single buffered']
    #allocation4 [shape = 's32[1]{0}', space=sflag, size = 0x4, scoped, tag = 'scoped memory for gcn_forward.2']
    #allocation5 [shape = 'u8[32768]{0}', space=vmem, size = 0x8000, scoped, tag = 'input window, operand 1, single buffered']
    #allocation6 [shape = 's32[1]{0}', space=sflag, size = 0x4, scoped, tag = 'scoped memory for gcn_forward.2']
    #allocation7 [shape = 'u8[4096]{0}', space=vmem, size = 0x1000, scoped, tag = 'input window, operand 2, single buffered']
    #allocation8 [shape = 'u8[32768]{0}', space=vmem, size = 0x8000, scoped, tag = 'input window, operand 3, single buffered']
    #allocation9 [shape = 's32[1]{0}', space=sflag, size = 0x4, scoped, tag = 'scoped memory for gcn_forward.2']
    %9 = vsyncpa [#allocation4], 0
    %10 = vsyncpa [#allocation6], 0
    %11 = vsyncpa [#allocation9], 0
    // Predicated region
    $region2: #{gcn_forward.2} parent=1 // pred_check
      _
    $region3: #{gcn_forward.2} parent=1 // pred_check_branch
      %13 = sbr.rel (0) target = $region5
    $region4: #{gcn_forward.2} parent=1 // pred_region
      %15 = vsyncadd [#allocation4], 0
      %s16 = sshll.u32 %s0, 4
      %s17 = int_to_ptr.hbm [resolvable:$true] %s16
      %s18 = sshll.u32 [#allocation3], 4
      %s19 = int_to_ptr.vmem [resolvable:$true] %s18
      %24 = dma.hbm_to_vmem [thread:$0]  %s17, 1024, %s19, [#allocation4], 64, 64, 4
    $region5: #{gcn_forward.2} parent=1 // pred_fallthru
      _
    // Predicated region
    $region6: #{gcn_forward.2} parent=1 // pred_check
      _
    $region7: #{gcn_forward.2} parent=1 // pred_check_branch
      %26 = sbr.rel (0) target = $region9
    $region8: #{gcn_forward.2} parent=1 // pred_region
      %28 = vsyncadd [#allocation6], 0
      %s29 = sshll.u32 %s1, 4
      %s30 = int_to_ptr.hbm [resolvable:$true] %s29
      %s31 = sshll.u32 [#allocation5], 4
      %s32 = int_to_ptr.vmem [resolvable:$true] %s31
      %37 = dma.hbm_to_vmem [thread:$0]  %s30, 1024, %s32, [#allocation6], 64, 64, 4
    $region9: #{gcn_forward.2} parent=1 // pred_fallthru
      _
    // Predicated region
    $region10: #{gcn_forward.2} parent=1 // pred_check
      _
    $region11: #{gcn_forward.2} parent=1 // pred_check_branch
      %39 = sbr.rel (0) target = $region13
    $region12: #{gcn_forward.2} parent=1 // pred_region
      %41 = vsyncadd [#allocation6], 0
      %s43 = sshll.u32 %s2, 4
      %s44 = int_to_ptr.hbm [resolvable:$true] %s43
      %s45 = sshll.u32 [#allocation7], 4
      %s46 = int_to_ptr.vmem [resolvable:$true] %s45
      %48 = dma.hbm_to_vmem [thread:$0]  %s44, 128, %s46, [#allocation6]
    $region13: #{gcn_forward.2} parent=1 // pred_fallthru
      _
    // Predicated region
    $region14: #{gcn_forward.2} parent=1 // pred_check
      _
    $region15: #{gcn_forward.2} parent=1 // pred_check_branch
      %50 = sbr.rel (0) target = $region17
    $region16: #{gcn_forward.2} parent=1 // pred_region
      %52 = vsyncadd [#allocation9], 0
      %s53 = sshll.u32 %s3, 4
      %s54 = int_to_ptr.hbm [resolvable:$true] %s53
      %s55 = sshll.u32 [#allocation8], 4
      %s56 = int_to_ptr.vmem [resolvable:$true] %s55
      %61 = dma.hbm_to_vmem [thread:$0]  %s54, 1024, %s56, [#allocation9], 64, 64, 4
    $region17: #{gcn_forward.2} parent=1 // pred_fallthru
      _
    // Predicated region
    $region18: #{gcn_forward.2} parent=1 // pred_check
      _
    $region19: #{gcn_forward.2} parent=1 // pred_check_branch
      %63 = sbr.rel (0) target = $region21
    $region20: #{gcn_forward.2} parent=1 // pred_region
      %65 = dma.done [#allocation4], 1024
    $region21: #{gcn_forward.2} parent=1 // pred_fallthru
      _
    // Predicated region
    $region22: #{gcn_forward.2} parent=1 // pred_check
      _
    $region23: #{gcn_forward.2} parent=1 // pred_check_branch
      %67 = sbr.rel (0) target = $region25
    $region24: #{gcn_forward.2} parent=1 // pred_region
      %69 = dma.done [#allocation6], 1024
    $region25: #{gcn_forward.2} parent=1 // pred_fallthru
      _
    // Predicated region
    $region26: #{gcn_forward.2} parent=1 // pred_check
      _
    $region27: #{gcn_forward.2} parent=1 // pred_check_branch
      %71 = sbr.rel (0) target = $region29
    $region28: #{gcn_forward.2} parent=1 // pred_region
      %73 = dma.done [#allocation6], 128
    $region29: #{gcn_forward.2} parent=1 // pred_fallthru
      _
    // Predicated region
    $region30: #{gcn_forward.2} parent=1 // pred_check
      _
    $region31: #{gcn_forward.2} parent=1 // pred_check_branch
      %75 = sbr.rel (0) target = $region33
    $region32: #{gcn_forward.2} parent=1 // pred_region
      %77 = dma.done [#allocation9], 1024
    $region33: #{gcn_forward.2} parent=1 // pred_fallthru
      _
    %p78 = scmp.eq.s32.totalorder 0, 0
    // Predicated region
    $region34: #{gcn_forward.2} parent=1 // pred_check
      %p79 = pneg %p78
    $region35: #{gcn_forward.2} parent=1 // pred_check_branch
      %81 = sbr.rel (%p79) target = $region37
    $region36: #{gcn_forward.2} parent=1 // pred_region
      %82 = vst [vmem:[#allocation2] sm:$0xff] 0.0
      %83 = vst [vmem:[#allocation2 + $0x8] sm:$0xff] 0.0
      %84 = vst [vmem:[#allocation2 + $0x10] sm:$0xff] 0.0
      %85 = vst [vmem:[#allocation2 + $0x18] sm:$0xff] 0.0
      %86 = vst [vmem:[#allocation2 + $0x20] sm:$0xff] 0.0
      %87 = vst [vmem:[#allocation2 + $0x28] sm:$0xff] 0.0
      %88 = vst [vmem:[#allocation2 + $0x30] sm:$0xff] 0.0
      %89 = vst [vmem:[#allocation2 + $0x38] sm:$0xff] 0.0
      %90 = vst [vmem:[#allocation2 + $0x40] sm:$0xff] 0.0
      %91 = vst [vmem:[#allocation2 + $0x48] sm:$0xff] 0.0
      %92 = vst [vmem:[#allocation2 + $0x50] sm:$0xff] 0.0
      %93 = vst [vmem:[#allocation2 + $0x58] sm:$0xff] 0.0
      %94 = vst [vmem:[#allocation2 + $0x60] sm:$0xff] 0.0
      %95 = vst [vmem:[#allocation2 + $0x68] sm:$0xff] 0.0
      %96 = vst [vmem:[#allocation2 + $0x70] sm:$0xff] 0.0
      %97 = vst [vmem:[#allocation2 + $0x78] sm:$0xff] 0.0
    $region37: #{gcn_forward.2} parent=1 // pred_fallthru
      _
    %s98 = smul.u32 0, 128
    %s99 = sshra.s32 %s98, 3
    %s100 = sand.u32 %s98, 7
    %s101 = smul.addr %s99, 4
    %s102 = scalar_lea.vmem [#allocation3], %s101
    %v103 = vld [vmem:[%s102] sm:$0xf]
    %v104 = vld [vmem:[%s102 + $0x4] sm:$0xf]
    %v105 = vld [vmem:[%s102 + $0x8] sm:$0xf]
    %v106 = vld [vmem:[%s102 + $0xc] sm:$0xf]
    %v107 = vld [vmem:[%s102 + $0x10] sm:$0xf]
    %v108 = vld [vmem:[%s102 + $0x14] sm:$0xf]
    %v109 = vld [vmem:[%s102 + $0x18] sm:$0xf]
    %v110 = vld [vmem:[%s102 + $0x1c] sm:$0xf]
    %v111 = vld [vmem:[%s102 + $0x20] sm:$0xf]
    %v112 = vld [vmem:[%s102 + $0x24] sm:$0xf]
    %v113 = vld [vmem:[%s102 + $0x28] sm:$0xf]
    %v114 = vld [vmem:[%s102 + $0x2c] sm:$0xf]
    %v115 = vld [vmem:[%s102 + $0x30] sm:$0xf]
    %v116 = vld [vmem:[%s102 + $0x34] sm:$0xf]
    %v117 = vld [vmem:[%s102 + $0x38] sm:$0xf]
    %v118 = vld [vmem:[%s102 + $0x3c] sm:$0xf]
    %v119 = vld [vmem:[#allocation5] sm:$0xf]
    %v120 = vld [vmem:[#allocation5 + $0x4] sm:$0xf]
    %v121 = vld [vmem:[#allocation5 + $0x8] sm:$0xf]
    %v122 = vld [vmem:[#allocation5 + $0xc] sm:$0xf]
    %v123 = vld [vmem:[#allocation5 + $0x10] sm:$0xf]
    %v124 = vld [vmem:[#allocation5 + $0x14] sm:$0xf]
    %v125 = vld [vmem:[#allocation5 + $0x18] sm:$0xf]
    %v126 = vld [vmem:[#allocation5 + $0x1c] sm:$0xf]
    %v127 = vld [vmem:[#allocation5 + $0x20] sm:$0xf]
    %v128 = vld [vmem:[#allocation5 + $0x24] sm:$0xf]
    %v129 = vld [vmem:[#allocation5 + $0x28] sm:$0xf]
    %v130 = vld [vmem:[#allocation5 + $0x2c] sm:$0xf]
    %v131 = vld [vmem:[#allocation5 + $0x30] sm:$0xf]
    %v132 = vld [vmem:[#allocation5 + $0x34] sm:$0xf]
    %v133 = vld [vmem:[#allocation5 + $0x38] sm:$0xf]
    %v134 = vld [vmem:[#allocation5 + $0x3c] sm:$0xf]
    %v135 = vld [vmem:[#allocation7] sm:$0x1]
    %v136 = vperm.slane %v135, 0
    %v153 = vunpack.c.l.b16 %v103
    %v154 = vunpack.c.l.b16 %v104
    %v155 = vunpack.c.l.b16 %v105
    %v156 = vunpack.c.l.b16 %v106
    %v157 = vunpack.c.l.b16 %v107
    %v158 = vunpack.c.l.b16 %v108
    %v159 = vunpack.c.l.b16 %v109
    %v160 = vunpack.c.l.b16 %v110
    %v161 = vunpack.c.l.b16 %v111
    %v162 = vunpack.c.l.b16 %v112
    %v163 = vunpack.c.l.b16 %v113
    %v164 = vunpack.c.l.b16 %v114
    %v165 = vunpack.c.l.b16 %v115
    %v166 = vunpack.c.l.b16 %v116
    %v167 = vunpack.c.l.b16 %v117
    %v168 = vunpack.c.l.b16 %v118
    %v169 = vpack.c.b16 %v154, %v153
    %v170 = vpack.c.b16 %v156, %v155
    %v171 = vpack.c.b16 %v158, %v157
    %v172 = vpack.c.b16 %v160, %v159
    %v173 = vpack.c.b16 %v162, %v161
    %v174 = vpack.c.b16 %v164, %v163
    %v175 = vpack.c.b16 %v166, %v165
    %v176 = vpack.c.b16 %v168, %v167
    %v201 = vunpack.c.l.b16 %v119
    %v202 = vunpack.c.l.b16 %v120
    %v203 = vunpack.c.l.b16 %v121
    %v204 = vunpack.c.l.b16 %v122
    %v205 = vunpack.c.l.b16 %v123
    %v206 = vunpack.c.l.b16 %v124
    %v207 = vunpack.c.l.b16 %v125
    %v208 = vunpack.c.l.b16 %v126
    %v209 = vunpack.c.l.b16 %v127
    %v210 = vunpack.c.l.b16 %v128
    %v211 = vunpack.c.l.b16 %v129
    %v212 = vunpack.c.l.b16 %v130
    %v213 = vunpack.c.l.b16 %v131
    %v214 = vunpack.c.l.b16 %v132
    %v215 = vunpack.c.l.b16 %v133
    %v216 = vunpack.c.l.b16 %v134
    %v217 = vpack.c.b16 %v202, %v201
    %v218 = vpack.c.b16 %v204, %v203
    %v219 = vpack.c.b16 %v206, %v205
    %v220 = vpack.c.b16 %v208, %v207
    %v221 = vpack.c.b16 %v210, %v209
    %v222 = vpack.c.b16 %v212, %v211
    %v223 = vpack.c.b16 %v214, %v213
    %v224 = vpack.c.b16 %v216, %v215
    %233 = vmatpush.bf16.msra.mxu0 %v224
    %234 = vmatpush.bf16.msra.mxu0 %v223
    %235 = vmatpush.bf16.msra.mxu0 %v222
    %236 = vmatpush.bf16.msra.mxu0 %v221
    %237 = vmatpush.bf16.msra.mxu0 %v220
    %238 = vmatpush.bf16.msra.mxu0 %v219
    %239 = vmatpush.bf16.msra.mxu0 %v218
    %240 = vmatpush.bf16.msra.mxu0 %v217
    %241 = vmatmul.bf16.gmra.mxu0 %v169
    %v242 = vpop.f32.mrf.mxu0
    %v243 = vadd.f32 %v136, %v242
    %v244 = vpop.f32.mrf.mxu0
    %v245 = vadd.f32 %v136, %v244
    %246 = vmatmul.bf16.gmra.mxu0 %v170
    %v247 = vpop.f32.mrf.mxu0
    %v248 = vadd.f32 %v136, %v247
    %v249 = vpop.f32.mrf.mxu0
    %v250 = vadd.f32 %v136, %v249
    %251 = vmatmul.bf16.gmra.mxu0 %v171
    %v252 = vpop.f32.mrf.mxu0
    %v253 = vadd.f32 %v136, %v252
    %v254 = vpop.f32.mrf.mxu0
    %v255 = vadd.f32 %v136, %v254
    %256 = vmatmul.bf16.gmra.mxu0 %v172
    %v257 = vpop.f32.mrf.mxu0
    %v258 = vadd.f32 %v136, %v257
    %v259 = vpop.f32.mrf.mxu0
    %v260 = vadd.f32 %v136, %v259
    %261 = vmatmul.bf16.gmra.mxu0 %v173
    %v262 = vpop.f32.mrf.mxu0
    %v263 = vadd.f32 %v136, %v262
    %v264 = vpop.f32.mrf.mxu0
    %v265 = vadd.f32 %v136, %v264
    %266 = vmatmul.bf16.gmra.mxu0 %v174
    %v267 = vpop.f32.mrf.mxu0
    %v268 = vadd.f32 %v136, %v267
    %v269 = vpop.f32.mrf.mxu0
    %v270 = vadd.f32 %v136, %v269
    %271 = vmatmul.bf16.gmra.mxu0 %v175
    %v272 = vpop.f32.mrf.mxu0
    %v273 = vadd.f32 %v136, %v272
    %v274 = vpop.f32.mrf.mxu0
    %v275 = vadd.f32 %v136, %v274
    %276 = vmatmul.bf16.gmra.mxu0 %v176
    %v277 = vpop.f32.mrf.mxu0
    %v278 = vadd.f32 %v136, %v277
    %v279 = vpop.f32.mrf.mxu0
    %v280 = vadd.f32 %v136, %v279
    %281 = vdwg.mxu0
    %v282 = vld [vmem:[#allocation2] sm:$0xff]
    %v283 = vld [vmem:[#allocation2 + $0x8] sm:$0xff]
    %v284 = vld [vmem:[#allocation2 + $0x10] sm:$0xff]
    %v285 = vld [vmem:[#allocation2 + $0x18] sm:$0xff]
    %v286 = vld [vmem:[#allocation2 + $0x20] sm:$0xff]
    %v287 = vld [vmem:[#allocation2 + $0x28] sm:$0xff]
    %v288 = vld [vmem:[#allocation2 + $0x30] sm:$0xff]
    %v289 = vld [vmem:[#allocation2 + $0x38] sm:$0xff]
    %v290 = vld [vmem:[#allocation2 + $0x40] sm:$0xff]
    %v291 = vld [vmem:[#allocation2 + $0x48] sm:$0xff]
    %v292 = vld [vmem:[#allocation2 + $0x50] sm:$0xff]
    %v293 = vld [vmem:[#allocation2 + $0x58] sm:$0xff]
    %v294 = vld [vmem:[#allocation2 + $0x60] sm:$0xff]
    %v295 = vld [vmem:[#allocation2 + $0x68] sm:$0xff]
    %v296 = vld [vmem:[#allocation2 + $0x70] sm:$0xff]
    %v297 = vld [vmem:[#allocation2 + $0x78] sm:$0xff]
    %v298 = vld [vmem:[#allocation8] sm:$0xf]
    %v299 = vld [vmem:[#allocation8 + $0x4] sm:$0xf]
    %v300 = vld [vmem:[#allocation8 + $0x8] sm:$0xf]
    %v301 = vld [vmem:[#allocation8 + $0xc] sm:$0xf]
    %v302 = vld [vmem:[#allocation8 + $0x10] sm:$0xf]
    %v303 = vld [vmem:[#allocation8 + $0x14] sm:$0xf]
    %v304 = vld [vmem:[#allocation8 + $0x18] sm:$0xf]
    %v305 = vld [vmem:[#allocation8 + $0x1c] sm:$0xf]
    %v306 = vld [vmem:[#allocation8 + $0x20] sm:$0xf]
    %v307 = vld [vmem:[#allocation8 + $0x24] sm:$0xf]
    %v308 = vld [vmem:[#allocation8 + $0x28] sm:$0xf]
    %v309 = vld [vmem:[#allocation8 + $0x2c] sm:$0xf]
    %v310 = vld [vmem:[#allocation8 + $0x30] sm:$0xf]
    %v311 = vld [vmem:[#allocation8 + $0x34] sm:$0xf]
    %v312 = vld [vmem:[#allocation8 + $0x38] sm:$0xf]
    %v313 = vld [vmem:[#allocation8 + $0x3c] sm:$0xf]
    %v314 = vpack.c.bf16 %v245, %v243
    %v315 = vpack.c.bf16 %v250, %v248
    %v316 = vpack.c.bf16 %v255, %v253
    %v317 = vpack.c.bf16 %v260, %v258
    %v318 = vpack.c.bf16 %v265, %v263
    %v319 = vpack.c.bf16 %v270, %v268
    %v320 = vpack.c.bf16 %v275, %v273
    %v321 = vpack.c.bf16 %v280, %v278
    %v338 = vunpack.c.l.b16 %v298
    %v339 = vunpack.c.l.b16 %v299
    %v340 = vunpack.c.l.b16 %v300
    %v341 = vunpack.c.l.b16 %v301
    %v342 = vunpack.c.l.b16 %v302
    %v343 = vunpack.c.l.b16 %v303
    %v344 = vunpack.c.l.b16 %v304
    %v345 = vunpack.c.l.b16 %v305
    %v346 = vunpack.c.l.b16 %v306
    %v347 = vunpack.c.l.b16 %v307
    %v348 = vunpack.c.l.b16 %v308
    %v349 = vunpack.c.l.b16 %v309
    %v350 = vunpack.c.l.b16 %v310
    %v351 = vunpack.c.l.b16 %v311
    %v352 = vunpack.c.l.b16 %v312
    %v353 = vunpack.c.l.b16 %v313
    %v354 = vpack.c.b16 %v339, %v338
    %v355 = vpack.c.b16 %v341, %v340
    %v356 = vpack.c.b16 %v343, %v342
    %v357 = vpack.c.b16 %v345, %v344
    %v358 = vpack.c.b16 %v347, %v346
    %v359 = vpack.c.b16 %v349, %v348
    %v360 = vpack.c.b16 %v351, %v350
    %v361 = vpack.c.b16 %v353, %v352
    %370 = vmatpush.bf16.msra.mxu0 %v321
    %371 = vmatpush.bf16.msra.mxu0 %v320
    %372 = vmatpush.bf16.msra.mxu0 %v319
    %373 = vmatpush.bf16.msra.mxu0 %v318
    %374 = vmatpush.bf16.msra.mxu0 %v317
    %375 = vmatpush.bf16.msra.mxu0 %v316
    %376 = vmatpush.bf16.msra.mxu0 %v315
    %377 = vmatpush.bf16.msra.mxu0 %v314
    %378 = vmatmul.bf16.gmra.mxu0 %v354
    %v379 = vpop.f32.mrf.mxu0
    %v380 = vadd.f32 0.0, %v379
    %v381 = vpop.f32.mrf.mxu0
    %v382 = vadd.f32 0.0, %v381
    %383 = vmatmul.bf16.gmra.mxu0 %v355
    %v384 = vpop.f32.mrf.mxu0
    %v385 = vadd.f32 0.0, %v384
    %v386 = vpop.f32.mrf.mxu0
    %v387 = vadd.f32 0.0, %v386
    %388 = vmatmul.bf16.gmra.mxu0 %v356
    %v389 = vpop.f32.mrf.mxu0
    %v390 = vadd.f32 0.0, %v389
    %v391 = vpop.f32.mrf.mxu0
    %v392 = vadd.f32 0.0, %v391
    %393 = vmatmul.bf16.gmra.mxu0 %v357
    %v394 = vpop.f32.mrf.mxu0
    %v395 = vadd.f32 0.0, %v394
    %v396 = vpop.f32.mrf.mxu0
    %v397 = vadd.f32 0.0, %v396
    %398 = vmatmul.bf16.gmra.mxu0 %v358
    %v399 = vpop.f32.mrf.mxu0
    %v400 = vadd.f32 0.0, %v399
    %v401 = vpop.f32.mrf.mxu0
    %v402 = vadd.f32 0.0, %v401
    %403 = vmatmul.bf16.gmra.mxu0 %v359
    %v404 = vpop.f32.mrf.mxu0
    %v405 = vadd.f32 0.0, %v404
    %v406 = vpop.f32.mrf.mxu0
    %v407 = vadd.f32 0.0, %v406
    %408 = vmatmul.bf16.gmra.mxu0 %v360
    %v409 = vpop.f32.mrf.mxu0
    %v410 = vadd.f32 0.0, %v409
    %v411 = vpop.f32.mrf.mxu0
    %v412 = vadd.f32 0.0, %v411
    %413 = vmatmul.bf16.gmra.mxu0 %v361
    %v414 = vpop.f32.mrf.mxu0
    %v415 = vadd.f32 0.0, %v414
    %v416 = vpop.f32.mrf.mxu0
    %v417 = vadd.f32 0.0, %v416
    %418 = vdwg.mxu0
    %v419 = vadd.f32 %v282, %v380
    %v420 = vadd.f32 %v283, %v382
    %v421 = vadd.f32 %v284, %v385
    %v422 = vadd.f32 %v285, %v387
    %v423 = vadd.f32 %v286, %v390
    %v424 = vadd.f32 %v287, %v392
    %v425 = vadd.f32 %v288, %v395
    %v426 = vadd.f32 %v289, %v397
    %v427 = vadd.f32 %v290, %v400
    %v428 = vadd.f32 %v291, %v402
    %v429 = vadd.f32 %v292, %v405
    %v430 = vadd.f32 %v293, %v407
    %v431 = vadd.f32 %v294, %v410
    %v432 = vadd.f32 %v295, %v412
    %v433 = vadd.f32 %v296, %v415
    %v434 = vadd.f32 %v297, %v417
    %435 = vst [vmem:[#allocation2] sm:$0xff] %v419
    %436 = vst [vmem:[#allocation2 + $0x8] sm:$0xff] %v420
    %437 = vst [vmem:[#allocation2 + $0x10] sm:$0xff] %v421
    %438 = vst [vmem:[#allocation2 + $0x18] sm:$0xff] %v422
    %439 = vst [vmem:[#allocation2 + $0x20] sm:$0xff] %v423
    %440 = vst [vmem:[#allocation2 + $0x28] sm:$0xff] %v424
    %441 = vst [vmem:[#allocation2 + $0x30] sm:$0xff] %v425
    %442 = vst [vmem:[#allocation2 + $0x38] sm:$0xff] %v426
    %443 = vst [vmem:[#allocation2 + $0x40] sm:$0xff] %v427
    %444 = vst [vmem:[#allocation2 + $0x48] sm:$0xff] %v428
    %445 = vst [vmem:[#allocation2 + $0x50] sm:$0xff] %v429
    %446 = vst [vmem:[#allocation2 + $0x58] sm:$0xff] %v430
    %447 = vst [vmem:[#allocation2 + $0x60] sm:$0xff] %v431
    %448 = vst [vmem:[#allocation2 + $0x68] sm:$0xff] %v432
    %449 = vst [vmem:[#allocation2 + $0x70] sm:$0xff] %v433
    %450 = vst [vmem:[#allocation2 + $0x78] sm:$0xff] %v434
    // Predicated region
    $region38: #{gcn_forward.2} parent=1 // pred_check
      %p451 = pneg %p78
    $region39: #{gcn_forward.2} parent=1 // pred_check_branch
      %453 = sbr.rel (%p451) target = $region41
    $region40: #{gcn_forward.2} parent=1 // pred_region
      %v454 = vld [vmem:[#allocation2] sm:$0xff]
      %v455 = vld [vmem:[#allocation2 + $0x8] sm:$0xff]
      %v456 = vld [vmem:[#allocation2 + $0x10] sm:$0xff]
      %v457 = vld [vmem:[#allocation2 + $0x18] sm:$0xff]
      %v458 = vld [vmem:[#allocation2 + $0x20] sm:$0xff]
      %v459 = vld [vmem:[#allocation2 + $0x28] sm:$0xff]
      %v460 = vld [vmem:[#allocation2 + $0x30] sm:$0xff]
      %v461 = vld [vmem:[#allocation2 + $0x38] sm:$0xff]
      %v462 = vld [vmem:[#allocation2 + $0x40] sm:$0xff]
      %v463 = vld [vmem:[#allocation2 + $0x48] sm:$0xff]
      %v464 = vld [vmem:[#allocation2 + $0x50] sm:$0xff]
      %v465 = vld [vmem:[#allocation2 + $0x58] sm:$0xff]
      %v466 = vld [vmem:[#allocation2 + $0x60] sm:$0xff]
      %v467 = vld [vmem:[#allocation2 + $0x68] sm:$0xff]
      %v468 = vld [vmem:[#allocation2 + $0x70] sm:$0xff]
      %v469 = vld [vmem:[#allocation2 + $0x78] sm:$0xff]
      %v470 = vld [vmem:[#allocation7 + $0x1] sm:$0x1]
      %v471 = vperm.slane %v470, 0
      %v472 = vadd.f32 %v454, %v471
      %v473 = vadd.f32 %v455, %v471
      %v474 = vadd.f32 %v456, %v471
      %v475 = vadd.f32 %v457, %v471
      %v476 = vadd.f32 %v458, %v471
      %v477 = vadd.f32 %v459, %v471
      %v478 = vadd.f32 %v460, %v471
      %v479 = vadd.f32 %v461, %v471
      %v480 = vadd.f32 %v462, %v471
      %v481 = vadd.f32 %v463, %v471
      %v482 = vadd.f32 %v464, %v471
      %v483 = vadd.f32 %v465, %v471
      %v484 = vadd.f32 %v466, %v471
      %v485 = vadd.f32 %v467, %v471
      %v486 = vadd.f32 %v468, %v471
      %v487 = vadd.f32 %v469, %v471
      %vm488 = vcmp.gt.f32.partialorder %v472, 0.0
      %vm489 = vcmp.gt.f32.partialorder %v473, 0.0
      %vm490 = vcmp.gt.f32.partialorder %v474, 0.0
      %vm491 = vcmp.gt.f32.partialorder %v475, 0.0
      %vm492 = vcmp.gt.f32.partialorder %v476, 0.0
      %vm493 = vcmp.gt.f32.partialorder %v477, 0.0
      %vm494 = vcmp.gt.f32.partialorder %v478, 0.0
      %vm495 = vcmp.gt.f32.partialorder %v479, 0.0
      %vm496 = vcmp.gt.f32.partialorder %v480, 0.0
      %vm497 = vcmp.gt.f32.partialorder %v481, 0.0
      %vm498 = vcmp.gt.f32.partialorder %v482, 0.0
      %vm499 = vcmp.gt.f32.partialorder %v483, 0.0
      %vm500 = vcmp.gt.f32.partialorder %v484, 0.0
      %vm501 = vcmp.gt.f32.partialorder %v485, 0.0
      %vm502 = vcmp.gt.f32.partialorder %v486, 0.0
      %vm503 = vcmp.gt.f32.partialorder %v487, 0.0
      %v504 = vmul.f32 %v472, 0.01
      %v505 = vmul.f32 %v473, 0.01
      %v506 = vmul.f32 %v474, 0.01
      %v507 = vmul.f32 %v475, 0.01
      %v508 = vmul.f32 %v476, 0.01
      %v509 = vmul.f32 %v477, 0.01
      %v510 = vmul.f32 %v478, 0.01
      %v511 = vmul.f32 %v479, 0.01
      %v512 = vmul.f32 %v480, 0.01
      %v513 = vmul.f32 %v481, 0.01
      %v514 = vmul.f32 %v482, 0.01
      %v515 = vmul.f32 %v483, 0.01
      %v516 = vmul.f32 %v484, 0.01
      %v517 = vmul.f32 %v485, 0.01
      %v518 = vmul.f32 %v486, 0.01
      %v519 = vmul.f32 %v487, 0.01
      %v520 = vsel %vm488, %v472, %v504
      %v521 = vsel %vm489, %v473, %v505
      %v522 = vsel %vm490, %v474, %v506
      %v523 = vsel %vm491, %v475, %v507
      %v524 = vsel %vm492, %v476, %v508
      %v525 = vsel %vm493, %v477, %v509
      %v526 = vsel %vm494, %v478, %v510
      %v527 = vsel %vm495, %v479, %v511
      %v528 = vsel %vm496, %v480, %v512
      %v529 = vsel %vm497, %v481, %v513
      %v530 = vsel %vm498, %v482, %v514
      %v531 = vsel %vm499, %v483, %v515
      %v532 = vsel %vm500, %v484, %v516
      %v533 = vsel %vm501, %v485, %v517
      %v534 = vsel %vm502, %v486, %v518
      %v535 = vsel %vm503, %v487, %v519
      %v536 = vpack.c.bf16 %v520, %v520
      %v537 = vpack.c.bf16 %v521, %v521
      %v538 = vpack.c.bf16 %v522, %v522
      %v539 = vpack.c.bf16 %v523, %v523
      %v540 = vpack.c.bf16 %v524, %v524
      %v541 = vpack.c.bf16 %v525, %v525
      %v542 = vpack.c.bf16 %v526, %v526
      %v543 = vpack.c.bf16 %v527, %v527
      %v544 = vpack.c.bf16 %v528, %v528
      %v545 = vpack.c.bf16 %v529, %v529
      %v546 = vpack.c.bf16 %v530, %v530
      %v547 = vpack.c.bf16 %v531, %v531
      %v548 = vpack.c.bf16 %v532, %v532
      %v549 = vpack.c.bf16 %v533, %v533
      %v550 = vpack.c.bf16 %v534, %v534
      %v551 = vpack.c.bf16 %v535, %v535
      %552 = vst [vmem:[%s4] sm:$0xf] %v536
      %553 = vst [vmem:[%s4 + $0x4] sm:$0xf] %v537
      %554 = vst [vmem:[%s4 + $0x8] sm:$0xf] %v538
      %555 = vst [vmem:[%s4 + $0xc] sm:$0xf] %v539
      %556 = vst [vmem:[%s4 + $0x10] sm:$0xf] %v540
      %557 = vst [vmem:[%s4 + $0x14] sm:$0xf] %v541
      %558 = vst [vmem:[%s4 + $0x18] sm:$0xf] %v542
      %559 = vst [vmem:[%s4 + $0x1c] sm:$0xf] %v543
      %560 = vst [vmem:[%s4 + $0x20] sm:$0xf] %v544
      %561 = vst [vmem:[%s4 + $0x24] sm:$0xf] %v545
      %562 = vst [vmem:[%s4 + $0x28] sm:$0xf] %v546
      %563 = vst [vmem:[%s4 + $0x2c] sm:$0xf] %v547
      %564 = vst [vmem:[%s4 + $0x30] sm:$0xf] %v548
      %565 = vst [vmem:[%s4 + $0x34] sm:$0xf] %v549
      %566 = vst [vmem:[%s4 + $0x38] sm:$0xf] %v550
      %567 = vst [vmem:[%s4 + $0x3c] sm:$0xf] %v551
    $region41: #{gcn_forward.2} parent=1 // pred_fallthru
      _
    // Predicated region
    $region42: #{gcn_forward.2} parent=1 // pred_check
      _
    $region43: #{gcn_forward.2} parent=1 // pred_check_branch
      %569 = sbr.rel (0) target = $region45
    $region44: #{gcn_forward.2} parent=1 // pred_region
      _
    $region45: #{gcn_forward.2} parent=1 // pred_fallthru
      _
    // Predicated region
    $region46: #{gcn_forward.2} parent=1 // pred_check
      _
    $region47: #{gcn_forward.2} parent=1 // pred_check_branch
      %571 = sbr.rel (0) target = $region49
    $region48: #{gcn_forward.2} parent=1 // pred_region
      _
    $region49: #{gcn_forward.2} parent=1 // pred_fallthru
      _
    %572 = vsyncpa [#allocation4], 1
    %573 = vsyncpa [#allocation6], 1
    %574 = vsyncpa [#allocation9], 1

</llo_original>
